<compile_context>
chip_gen: v6e
topology: v6e:2x2x1
jax: 0.10.0
libtpu: 0.0.40
codegen_flags: <defaults>
</compile_context>

<pallas_src>
import math
import functools

import jax
import jax.numpy as jnp
from jax.experimental import pallas as pl
from jax.experimental.pallas import tpu as pltpu


def _vmem_limit_bytes() -> int:
    """Derive a VMEM budget from the actual chip (v7x: 64 MiB/TC, v5e/v6e: 128)."""
    try:
        cap = int(pltpu.get_tpu_info().vmem_capacity_bytes)
    except Exception:
        cap = 64 * 1024 * 1024          # conservative fallback (v7x-sized)
    return min(int(cap * 3 // 4), 96 * 1024 * 1024)


# ---------------------------------------------------------------------------
# Kernel 1: fused Q/K/V projection into head-major bf16 layout.
# Grid: (batch, sequence-tile); per-head 2-D matmuls write directly into the
# (1, h, TS, d_k) output slabs (no wide f32 intermediate, no lane slicing).
# ---------------------------------------------------------------------------
def qkv_proj_kernel(q_ref, k_ref, v_ref, wq_ref, wk_ref, wv_ref,
                    qh_ref, kh_ref, vh_ref, *, h: int):
    q = q_ref[0]                         # (TS, D) bf16
    k = k_ref[0]
    v = v_ref[0]
    for head in range(h):                # static unroll; each iter is a 2-D MXU GEMM
        qh_ref[0, head] = jnp.dot(q, wq_ref[head],
                                  preferred_element_type=jnp.float32
                                  ).astype(jnp.bfloat16)
        kh_ref[0, head] = jnp.dot(k, wk_ref[head],
                                  preferred_element_type=jnp.float32
                                  ).astype(jnp.bfloat16)
        vh_ref[0, head] = jnp.dot(v, wv_ref[head],
                                  preferred_element_type=jnp.float32
                                  ).astype(jnp.bfloat16)


# ---------------------------------------------------------------------------
# Kernel 2: attention core + fused head-concat / output projection.
# Grid: (batch, query-tile), BOTH axes parallel (no scratch / carried state).
# ---------------------------------------------------------------------------
def mha_attn_kernel(qh_ref, kh_ref, vh_ref, mask_ref, wo_ref, o_ref):
    qh = qh_ref[0]                       # (h, TQ, d_k) bf16, already 1/sqrt(d_k)-scaled
    kh = kh_ref[0]                       # (h, S,  d_k) bf16
    vh = vh_ref[0]                       # (h, S,  d_k) bf16

    # Head-batched QK^T on the MXU; f32 accumulation.
    s = jnp.einsum("hqd,hkd->hqk", qh, kh,
                   preferred_element_type=jnp.float32)          # (h, TQ, S) f32

    # masked_fill(mask == 0, -1e9); mask is exact {0, 1} (normalized on host).
    mask = mask_ref[0]                                           # (TQ, S) bf16
    s = jnp.where(mask[None, :, :] == 0, jnp.float32(-1e9), s)

    # Numerically stable softmax in f32 (exact reciprocal for module parity).
    m = jnp.max(s, axis=-1, keepdims=True)
    e = jnp.exp(s - m)
    p = e * pl.reciprocal(jnp.sum(e, axis=-1, keepdims=True), approx=False)

    # TODO(synk): for very long sequences, add a KV-tile grid axis with
    # online softmax (flash-style) instead of the full (h, TQ, S) score tile.
    # TODO(synk): training-mode dropout on attention weights and the cached
    # `attention_scores` attribute are not implemented (eval-mode forward).

    # Head-batched PV, then fused concat + W_o: batched matmul against the
    # host-reshaped (h, d_k, D) output weights, summed over heads.
    o_h = jnp.einsum("hqk,hkd->hqd", p.astype(jnp.bfloat16), vh,
                     preferred_element_type=jnp.float32)         # (h, TQ, d_k)
    proj = jnp.einsum("hqd,hdo->hqo", o_h.astype(jnp.bfloat16), wo_ref[...],
                      preferred_element_type=jnp.float32)        # (h, TQ, D)
    o_ref[0] = jnp.sum(proj, axis=0).astype(o_ref.dtype)


def multi_head_attention(q, k, v, mask, wq, wk, wv, wo, *, h: int,
                         block_q: int | None = None,
                         block_s: int | None = None,
                         out_dtype=None):
    """q, k, v: (B, S, D); mask: (B, S, S), nonzero = attend, 0 = masked;
    w*: (D, D) in PyTorch nn.Linear layout (out_features, in_features)."""
    B, S, D = q.shape
    assert D % h == 0, "d_model must be divisible by h"
    d_k = D // h

    if block_q is None:
        block_q = S if S <= 256 else (256 if S % 256 == 0 else 128)
    assert S % block_q == 0, "sequence length must be divisible by block_q"
    assert block_q == S or block_q % 16 == 0, "block_q must respect bf16 sublane tiling"
    nq = S // block_q
    if block_s is None:
        block_s = block_q
    assert S % block_s == 0
    ns = S // block_s
    out_dtype = q.dtype if out_dtype is None else out_dtype

    bf = jnp.bfloat16
    qb = q.astype(bf)
    kb = k.astype(bf)
    vb = v.astype(bf)

    # Host weight prep: nn.Linear computes x @ W.T.  Split output features into
    # per-head slabs (h, D, d_k); fold 1/sqrt(d_k) into the Q weights (saves the
    # per-score multiply in-kernel).  W_o is split by *input* feature into
    # (h, d_k, D) for the fused concat + output projection.
    scale = 1.0 / math.sqrt(d_k)
    wq_r = (wq.T.astype(jnp.float32) * scale).reshape(D, h, d_k).transpose(1, 0, 2).astype(bf)
    wk_r = wk.T.reshape(D, h, d_k).transpose(1, 0, 2).astype(bf)
    wv_r = wv.T.reshape(D, h, d_k).transpose(1, 0, 2).astype(bf)
    wo_r = wo.T.reshape(h, d_k, D).astype(bf)

    # Normalize the mask to exact {0, 1} on the host (robust for any float mask),
    # and ship it as bf16 (half the HBM bytes of f32).
    mask_b = (mask != 0).astype(bf)

    vmem_limit = _vmem_limit_bytes()

    # -------------------- 1) Q/K/V projections --------------------
    seq_spec = pl.BlockSpec((1, block_s, D), lambda b, s: (b, s, 0))
    w_spec = pl.BlockSpec((h, D, d_k), lambda b, s: (0, 0, 0))          # constant: one DMA
    head_out_spec = pl.BlockSpec((1, h, block_s, d_k), lambda b, s: (b, 0, s, 0))

    proj_cost = pl.CostEstimate(
        flops=int(2 * 3 * B * S * D * D),
        transcendentals=0,
        bytes_accessed=int(3 * B * S * D * 2 * 2 + 3 * D * D * 2))

    qh, kh, vh = pl.pallas_call(
        functools.partial(qkv_proj_kernel, h=h),
        out_shape=tuple(jax.ShapeDtypeStruct((B, h, S, d_k), bf) for _ in range(3)),
        grid_spec=pltpu.PrefetchScalarGridSpec(
            num_scalar_prefetch=0,
            grid=(B, ns),
            in_specs=[seq_spec, seq_spec, seq_spec, w_spec, w_spec, w_spec],
            out_specs=(head_out_spec, head_out_spec, head_out_spec)),
        compiler_params=pltpu.CompilerParams(
            dimension_semantics=("parallel", "parallel"),
            vmem_limit_bytes=vmem_limit),
        cost_estimate=proj_cost,
    )(qb, kb, vb, wq_r, wk_r, wv_r)

    # -------------------- 2) attention + output projection --------------------
    qh_spec = pl.BlockSpec((1, h, block_q, d_k), lambda b, i: (b, 0, i, 0))
    kv_spec = pl.BlockSpec((1, h, S, d_k), lambda b, i: (b, 0, 0, 0))   # revisited per batch
    mask_spec = pl.BlockSpec((1, block_q, S), lambda b, i: (b, i, 0))
    wo_spec = pl.BlockSpec((h, d_k, D), lambda b, i: (0, 0, 0))         # constant: one DMA
    out_spec = pl.BlockSpec((1, block_q, D), lambda b, i: (b, i, 0))

    attn_cost = pl.CostEstimate(
        flops=int(4 * B * S * S * D + 2 * B * S * D * D),
        transcendentals=int(B * h * S * S),
        bytes_accessed=int(3 * B * S * D * 2 + B * S * S * 2 + D * D * 2
                           + B * S * D * jnp.dtype(out_dtype).itemsize))

    out = pl.pallas_call(
        mha_attn_kernel,
        out_shape=jax.ShapeDtypeStruct((B, S, D), out_dtype),
        grid_spec=pltpu.PrefetchScalarGridSpec(
            num_scalar_prefetch=0,
            grid=(B, nq),
            in_specs=[qh_spec, kv_spec, kv_spec, mask_spec, wo_spec],
            out_specs=out_spec),
        compiler_params=pltpu.CompilerParams(
            dimension_semantics=("parallel", "parallel"),   # no carried state: megacore-friendly
            vmem_limit_bytes=vmem_limit),
        cost_estimate=attn_cost,
    )(qh, kh, vh, mask_b, wo_r)
    return out


# ---------------------------------------------------------------------------
# References for verification.
# ---------------------------------------------------------------------------
def reference_mha_f32(q, k, v, mask, wq, wk, wv, wo, *, h: int):
    """Pure-JAX f32 reference mirroring the PyTorch forward (eval mode)."""
    B, S, D = q.shape
    d_k = D // h
    Q = (q @ wq.T).reshape(B, S, h, d_k).transpose(0, 2, 1, 3)
    K = (k @ wk.T).reshape(B, S, h, d_k).transpose(0, 2, 1, 3)
    V = (v @ wv.T).reshape(B, S, h, d_k).transpose(0, 2, 1, 3)
    s = (Q @ jnp.swapaxes(K, -2, -1)) / math.sqrt(d_k)
    s = jnp.where(mask[:, None, :, :] == 0, -1e9, s)
    p = jax.nn.softmax(s, axis=-1)
    x = (p @ V).transpose(0, 2, 1, 3).reshape(B, S, D)
    return x @ wo.T


def reference_mha_mixed(q, k, v, mask, wq, wk, wv, wo, *, h: int):
    """Reference mirroring the kernel's precision recipe (bf16 matmul inputs,
    f32 accumulation, scale folded into W_q, bf16 head-major intermediates)."""
    bf, f32 = jnp.bfloat16, jnp.float32
    B, S, D = q.shape
    d_k = D // h
    scale = 1.0 / math.sqrt(d_k)
    wq_t = (wq.T.astype(f32) * scale).astype(bf)
    wk_t = wk.T.astype(bf)
    wv_t = wv.T.astype(bf)
    wo_t = wo.T.astype(bf)

    def proj(x, w):
        y = jnp.einsum("bse,ed->bsd", x.astype(bf), w, preferred_element_type=f32)
        return y.reshape(B, S, h, d_k).transpose(0, 2, 1, 3).astype(bf)

    Q, K, V = proj(q, wq_t), proj(k, wk_t), proj(v, wv_t)
    s = jnp.einsum("bhqd,bhkd->bhqk", Q, K, preferred_element_type=f32)
    s = jnp.where(mask[:, None, :, :] == 0, f32(-1e9), s)
    p = jax.nn.softmax(s, axis=-1)
    x = jnp.einsum("bhqk,bhkd->bhqd", p.astype(bf), V, preferred_element_type=f32).astype(bf)
    x = x.transpose(0, 2, 1, 3).reshape(B, S, D)
    return jnp.einsum("bsd,do->bso", x, wo_t, preferred_element_type=f32)


if __name__ == "__main__":
    B, S, D, H = 2, 64, 64, 4          # small demo shapes; d_k = 16, 2 query tiles

    key = jax.random.PRNGKey(0)
    kq, kk, kv, kwq, kwk, kwv, kwo = jax.random.split(key, 7)

    q = jax.random.normal(kq, (B, S, D), dtype=jnp.float32)
    k = jax.random.normal(kk, (B, S, D), dtype=jnp.float32)
    v = jax.random.normal(kv, (B, S, D), dtype=jnp.float32)

    # Deterministic Linear weights (PyTorch layout: (out_features, in_features)).
    bound = 1.0 / math.sqrt(D)
    wq = jax.random.uniform(kwq, (D, D), jnp.float32, -bound, bound)
    wk = jax.random.uniform(kwk, (D, D), jnp.float32, -bound, bound)
    wv = jax.random.uniform(kwv, (D, D), jnp.float32, -bound, bound)
    wo = jax.random.uniform(kwo, (D, D), jnp.float32, -bound, bound)

    # Causal mask (1 = attend, 0 = masked), per batch element.
    causal = jnp.tril(jnp.ones((S, S), dtype=jnp.float32))
    mask = jnp.broadcast_to(causal, (B, S, S))

    out = multi_head_attention(q, k, v, mask, wq, wk, wv, wo, h=H, block_q=32)
    out = jax.block_until_ready(out)

    ref_mixed = reference_mha_mixed(q, k, v, mask, wq, wk, wv, wo, h=H)
    ref_f32 = reference_mha_f32(q, k, v, mask, wq, wk, wv, wo, h=H)

    assert out.shape == (B, S, D)
    assert jnp.allclose(out, ref_mixed, atol=2e-2, rtol=2e-2)   # same precision recipe
    assert jnp.allclose(out, ref_f32, atol=7e-2, rtol=7e-2)     # vs full-f32 module semantics

    print("KERNEL_OK")
</pallas_src>

<mosaic_0001>
module attributes {stable_mosaic.version = 11 : i64} {
  func.func @qkv_proj_kernel(%arg0: i32, %arg1: i32, %arg2: memref<1x32x64xbf16, #tpu.memory_space<vmem>>, %arg3: memref<1x32x64xbf16, #tpu.memory_space<vmem>>, %arg4: memref<1x32x64xbf16, #tpu.memory_space<vmem>>, %arg5: memref<4x64x16xbf16, #tpu.memory_space<vmem>>, %arg6: memref<4x64x16xbf16, #tpu.memory_space<vmem>>, %arg7: memref<4x64x16xbf16, #tpu.memory_space<vmem>>, %arg8: memref<1x4x32x16xbf16, #tpu.memory_space<vmem>>, %arg9: memref<1x4x32x16xbf16, #tpu.memory_space<vmem>>, %arg10: memref<1x4x32x16xbf16, #tpu.memory_space<vmem>>) attributes {dimension_semantics = [#tpu.dimension_semantics<parallel>, #tpu.dimension_semantics<parallel>], iteration_bounds = array<i64: 2, 2>, scalar_prefetch = 0 : i64, scratch_operands = 0 : i64, tpu.core_type = #tpu.core_type<tc>, window_params = [{transform_indices = @transform_0, window_bounds = array<i64: 1, 32, 64>}, {transform_indices = @transform_1, window_bounds = array<i64: 1, 32, 64>}, {transform_indices = @transform_2, window_bounds = array<i64: 1, 32, 64>}, {pipeline_mode = #tpu.pipeline_mode<synchronous>, transform_indices = @transform_3, window_bounds = array<i64: 4, 64, 16>}, {pipeline_mode = #tpu.pipeline_mode<synchronous>, transform_indices = @transform_4, window_bounds = array<i64: 4, 64, 16>}, {pipeline_mode = #tpu.pipeline_mode<synchronous>, transform_indices = @transform_5, window_bounds = array<i64: 4, 64, 16>}, {transform_indices = @transform_6, window_bounds = array<i64: 1, 4, 32, 16>}, {transform_indices = @transform_7, window_bounds = array<i64: 1, 4, 32, 16>}, {transform_indices = @transform_8, window_bounds = array<i64: 1, 4, 32, 16>}]} {
    %c0 = arith.constant 0 : index
    %c0_0 = arith.constant 0 : index
    %c0_1 = arith.constant 0 : index
    %0 = vector.load %arg2[%c0, %c0_0, %c0_1] : memref<1x32x64xbf16, #tpu.memory_space<vmem>>, vector<1x32x64xbf16>
    %1 = vector.shape_cast %0 : vector<1x32x64xbf16> to vector<32x64xbf16>
    %c0_2 = arith.constant 0 : index
    %c0_3 = arith.constant 0 : index
    %c0_4 = arith.constant 0 : index
    %2 = vector.load %arg3[%c0_2, %c0_3, %c0_4] : memref<1x32x64xbf16, #tpu.memory_space<vmem>>, vector<1x32x64xbf16>
    %3 = vector.shape_cast %2 : vector<1x32x64xbf16> to vector<32x64xbf16>
    %c0_5 = arith.constant 0 : index
    %c0_6 = arith.constant 0 : index
    %c0_7 = arith.constant 0 : index
    %4 = vector.load %arg4[%c0_5, %c0_6, %c0_7] : memref<1x32x64xbf16, #tpu.memory_space<vmem>>, vector<1x32x64xbf16>
    %5 = vector.shape_cast %4 : vector<1x32x64xbf16> to vector<32x64xbf16>
    %c0_8 = arith.constant 0 : index
    %c0_9 = arith.constant 0 : index
    %c0_10 = arith.constant 0 : index
    %6 = vector.load %arg5[%c0_8, %c0_9, %c0_10] : memref<4x64x16xbf16, #tpu.memory_space<vmem>>, vector<1x64x16xbf16>
    %7 = vector.shape_cast %6 : vector<1x64x16xbf16> to vector<64x16xbf16>
    %cst = arith.constant dense<0.000000e+00> : vector<32x16xf32>
    %8 = tpu.matmul %1, %7, %cst {dimension_numbers = #tpu.dot_dimension_numbers<[1], [0], [0], [1], [0, 0, 1, 1], [], []>} : vector<32x64xbf16>, vector<64x16xbf16>, vector<32x16xf32> -> vector<32x16xf32>
    %9 = arith.truncf %8 : vector<32x16xf32> to vector<32x16xbf16>
    %c0_11 = arith.constant 0 : index
    %c0_12 = arith.constant 0 : index
    %c0_13 = arith.constant 0 : index
    %c0_14 = arith.constant 0 : index
    %10 = vector.load %arg8[%c0_11, %c0_12, %c0_13, %c0_14] : memref<1x4x32x16xbf16, #tpu.memory_space<vmem>>, vector<1x1x32x16xbf16>
    %11 = vector.shape_cast %10 : vector<1x1x32x16xbf16> to vector<32x16xbf16>
    %12 = vector.shape_cast %9 : vector<32x16xbf16> to vector<1x1x32x16xbf16>
    tpu.vector_store %arg8[%c0_11, %c0_12, %c0_13, %c0_14], %12 {strides = array<i32>} : memref<1x4x32x16xbf16, #tpu.memory_space<vmem>>, vector<1x1x32x16xbf16>,
    %c0_15 = arith.constant 0 : index
    %c0_16 = arith.constant 0 : index
    %c0_17 = arith.constant 0 : index
    %13 = vector.load %arg6[%c0_15, %c0_16, %c0_17] : memref<4x64x16xbf16, #tpu.memory_space<vmem>>, vector<1x64x16xbf16>
    %14 = vector.shape_cast %13 : vector<1x64x16xbf16> to vector<64x16xbf16>
    %cst_18 = arith.constant dense<0.000000e+00> : vector<32x16xf32>
    %15 = tpu.matmul %3, %14, %cst_18 {dimension_numbers = #tpu.dot_dimension_numbers<[1], [0], [0], [1], [0, 0, 1, 1], [], []>} : vector<32x64xbf16>, vector<64x16xbf16>, vector<32x16xf32> -> vector<32x16xf32>
    %16 = arith.truncf %15 : vector<32x16xf32> to vector<32x16xbf16>
    %c0_19 = arith.constant 0 : index
    %c0_20 = arith.constant 0 : index
    %c0_21 = arith.constant 0 : index
    %c0_22 = arith.constant 0 : index
    %17 = vector.load %arg9[%c0_19, %c0_20, %c0_21, %c0_22] : memref<1x4x32x16xbf16, #tpu.memory_space<vmem>>, vector<1x1x32x16xbf16>
    %18 = vector.shape_cast %17 : vector<1x1x32x16xbf16> to vector<32x16xbf16>
    %19 = vector.shape_cast %16 : vector<32x16xbf16> to vector<1x1x32x16xbf16>
    tpu.vector_store %arg9[%c0_19, %c0_20, %c0_21, %c0_22], %19 {strides = array<i32>} : memref<1x4x32x16xbf16, #tpu.memory_space<vmem>>, vector<1x1x32x16xbf16>,
    %c0_23 = arith.constant 0 : index
    %c0_24 = arith.constant 0 : index
    %c0_25 = arith.constant 0 : index
    %20 = vector.load %arg7[%c0_23, %c0_24, %c0_25] : memref<4x64x16xbf16, #tpu.memory_space<vmem>>, vector<1x64x16xbf16>
    %21 = vector.shape_cast %20 : vector<1x64x16xbf16> to vector<64x16xbf16>
    %cst_26 = arith.constant dense<0.000000e+00> : vector<32x16xf32>
    %22 = tpu.matmul %5, %21, %cst_26 {dimension_numbers = #tpu.dot_dimension_numbers<[1], [0], [0], [1], [0, 0, 1, 1], [], []>} : vector<32x64xbf16>, vector<64x16xbf16>, vector<32x16xf32> -> vector<32x16xf32>
    %23 = arith.truncf %22 : vector<32x16xf32> to vector<32x16xbf16>
    %c0_27 = arith.constant 0 : index
    %c0_28 = arith.constant 0 : index
    %c0_29 = arith.constant 0 : index
    %c0_30 = arith.constant 0 : index
    %24 = vector.load %arg10[%c0_27, %c0_28, %c0_29, %c0_30] : memref<1x4x32x16xbf16, #tpu.memory_space<vmem>>, vector<1x1x32x16xbf16>
    %25 = vector.shape_cast %24 : vector<1x1x32x16xbf16> to vector<32x16xbf16>
    %26 = vector.shape_cast %23 : vector<32x16xbf16> to vector<1x1x32x16xbf16>
    tpu.vector_store %arg10[%c0_27, %c0_28, %c0_29, %c0_30], %26 {strides = array<i32>} : memref<1x4x32x16xbf16, #tpu.memory_space<vmem>>, vector<1x1x32x16xbf16>,
    %c1 = arith.constant 1 : index
    %c0_31 = arith.constant 0 : index
    %c0_32 = arith.constant 0 : index
    %27 = vector.load %arg5[%c1, %c0_31, %c0_32] : memref<4x64x16xbf16, #tpu.memory_space<vmem>>, vector<1x64x16xbf16>
    %28 = vector.shape_cast %27 : vector<1x64x16xbf16> to vector<64x16xbf16>
    %cst_33 = arith.constant dense<0.000000e+00> : vector<32x16xf32>
    %29 = tpu.matmul %1, %28, %cst_33 {dimension_numbers = #tpu.dot_dimension_numbers<[1], [0], [0], [1], [0, 0, 1, 1], [], []>} : vector<32x64xbf16>, vector<64x16xbf16>, vector<32x16xf32> -> vector<32x16xf32>
    %30 = arith.truncf %29 : vector<32x16xf32> to vector<32x16xbf16>
    %c0_34 = arith.constant 0 : index
    %c1_35 = arith.constant 1 : index
    %c0_36 = arith.constant 0 : index
    %c0_37 = arith.constant 0 : index
    %31 = vector.load %arg8[%c0_34, %c1_35, %c0_36, %c0_37] : memref<1x4x32x16xbf16, #tpu.memory_space<vmem>>, vector<1x1x32x16xbf16>
    %32 = vector.shape_cast %31 : vector<1x1x32x16xbf16> to vector<32x16xbf16>
    %33 = vector.shape_cast %30 : vector<32x16xbf16> to vector<1x1x32x16xbf16>
    tpu.vector_store %arg8[%c0_34, %c1_35, %c0_36, %c0_37], %33 {strides = array<i32>} : memref<1x4x32x16xbf16, #tpu.memory_space<vmem>>, vector<1x1x32x16xbf16>,
    %c1_38 = arith.constant 1 : index
    %c0_39 = arith.constant 0 : index
    %c0_40 = arith.constant 0 : index
    %34 = vector.load %arg6[%c1_38, %c0_39, %c0_40] : memref<4x64x16xbf16, #tpu.memory_space<vmem>>, vector<1x64x16xbf16>
    %35 = vector.shape_cast %34 : vector<1x64x16xbf16> to vector<64x16xbf16>
    %cst_41 = arith.constant dense<0.000000e+00> : vector<32x16xf32>
    %36 = tpu.matmul %3, %35, %cst_41 {dimension_numbers = #tpu.dot_dimension_numbers<[1], [0], [0], [1], [0, 0, 1, 1], [], []>} : vector<32x64xbf16>, vector<64x16xbf16>, vector<32x16xf32> -> vector<32x16xf32>
    %37 = arith.truncf %36 : vector<32x16xf32> to vector<32x16xbf16>
    %c0_42 = arith.constant 0 : index
    %c1_43 = arith.constant 1 : index
    %c0_44 = arith.constant 0 : index
    %c0_45 = arith.constant 0 : index
    %38 = vector.load %arg9[%c0_42, %c1_43, %c0_44, %c0_45] : memref<1x4x32x16xbf16, #tpu.memory_space<vmem>>, vector<1x1x32x16xbf16>
    %39 = vector.shape_cast %38 : vector<1x1x32x16xbf16> to vector<32x16xbf16>
    %40 = vector.shape_cast %37 : vector<32x16xbf16> to vector<1x1x32x16xbf16>
    tpu.vector_store %arg9[%c0_42, %c1_43, %c0_44, %c0_45], %40 {strides = array<i32>} : memref<1x4x32x16xbf16, #tpu.memory_space<vmem>>, vector<1x1x32x16xbf16>,
    %c1_46 = arith.constant 1 : index
    %c0_47 = arith.constant 0 : index
    %c0_48 = arith.constant 0 : index
    %41 = vector.load %arg7[%c1_46, %c0_47, %c0_48] : memref<4x64x16xbf16, #tpu.memory_space<vmem>>, vector<1x64x16xbf16>
    %42 = vector.shape_cast %41 : vector<1x64x16xbf16> to vector<64x16xbf16>
    %cst_49 = arith.constant dense<0.000000e+00> : vector<32x16xf32>
    %43 = tpu.matmul %5, %42, %cst_49 {dimension_numbers = #tpu.dot_dimension_numbers<[1], [0], [0], [1], [0, 0, 1, 1], [], []>} : vector<32x64xbf16>, vector<64x16xbf16>, vector<32x16xf32> -> vector<32x16xf32>
    %44 = arith.truncf %43 : vector<32x16xf32> to vector<32x16xbf16>
    %c0_50 = arith.constant 0 : index
    %c1_51 = arith.constant 1 : index
    %c0_52 = arith.constant 0 : index
    %c0_53 = arith.constant 0 : index
    %45 = vector.load %arg10[%c0_50, %c1_51, %c0_52, %c0_53] : memref<1x4x32x16xbf16, #tpu.memory_space<vmem>>, vector<1x1x32x16xbf16>
    %46 = vector.shape_cast %45 : vector<1x1x32x16xbf16> to vector<32x16xbf16>
    %47 = vector.shape_cast %44 : vector<32x16xbf16> to vector<1x1x32x16xbf16>
    tpu.vector_store %arg10[%c0_50, %c1_51, %c0_52, %c0_53], %47 {strides = array<i32>} : memref<1x4x32x16xbf16, #tpu.memory_space<vmem>>, vector<1x1x32x16xbf16>,
    %c2 = arith.constant 2 : index
    %c0_54 = arith.constant 0 : index
    %c0_55 = arith.constant 0 : index
    %48 = vector.load %arg5[%c2, %c0_54, %c0_55] : memref<4x64x16xbf16, #tpu.memory_space<vmem>>, vector<1x64x16xbf16>
    %49 = vector.shape_cast %48 : vector<1x64x16xbf16> to vector<64x16xbf16>
    %cst_56 = arith.constant dense<0.000000e+00> : vector<32x16xf32>
    %50 = tpu.matmul %1, %49, %cst_56 {dimension_numbers = #tpu.dot_dimension_numbers<[1], [0], [0], [1], [0, 0, 1, 1], [], []>} : vector<32x64xbf16>, vector<64x16xbf16>, vector<32x16xf32> -> vector<32x16xf32>
    %51 = arith.truncf %50 : vector<32x16xf32> to vector<32x16xbf16>
    %c0_57 = arith.constant 0 : index
    %c2_58 = arith.constant 2 : index
    %c0_59 = arith.constant 0 : index
    %c0_60 = arith.constant 0 : index
    %52 = vector.load %arg8[%c0_57, %c2_58, %c0_59, %c0_60] : memref<1x4x32x16xbf16, #tpu.memory_space<vmem>>, vector<1x1x32x16xbf16>
    %53 = vector.shape_cast %52 : vector<1x1x32x16xbf16> to vector<32x16xbf16>
    %54 = vector.shape_cast %51 : vector<32x16xbf16> to vector<1x1x32x16xbf16>
    tpu.vector_store %arg8[%c0_57, %c2_58, %c0_59, %c0_60], %54 {strides = array<i32>} : memref<1x4x32x16xbf16, #tpu.memory_space<vmem>>, vector<1x1x32x16xbf16>,
    %c2_61 = arith.constant 2 : index
    %c0_62 = arith.constant 0 : index
    %c0_63 = arith.constant 0 : index
    %55 = vector.load %arg6[%c2_61, %c0_62, %c0_63] : memref<4x64x16xbf16, #tpu.memory_space<vmem>>, vector<1x64x16xbf16>
    %56 = vector.shape_cast %55 : vector<1x64x16xbf16> to vector<64x16xbf16>
    %cst_64 = arith.constant dense<0.000000e+00> : vector<32x16xf32>
    %57 = tpu.matmul %3, %56, %cst_64 {dimension_numbers = #tpu.dot_dimension_numbers<[1], [0], [0], [1], [0, 0, 1, 1], [], []>} : vector<32x64xbf16>, vector<64x16xbf16>, vector<32x16xf32> -> vector<32x16xf32>
    %58 = arith.truncf %57 : vector<32x16xf32> to vector<32x16xbf16>
    %c0_65 = arith.constant 0 : index
    %c2_66 = arith.constant 2 : index
    %c0_67 = arith.constant 0 : index
    %c0_68 = arith.constant 0 : index
    %59 = vector.load %arg9[%c0_65, %c2_66, %c0_67, %c0_68] : memref<1x4x32x16xbf16, #tpu.memory_space<vmem>>, vector<1x1x32x16xbf16>
    %60 = vector.shape_cast %59 : vector<1x1x32x16xbf16> to vector<32x16xbf16>
    %61 = vector.shape_cast %58 : vector<32x16xbf16> to vector<1x1x32x16xbf16>
    tpu.vector_store %arg9[%c0_65, %c2_66, %c0_67, %c0_68], %61 {strides = array<i32>} : memref<1x4x32x16xbf16, #tpu.memory_space<vmem>>, vector<1x1x32x16xbf16>,
    %c2_69 = arith.constant 2 : index
    %c0_70 = arith.constant 0 : index
    %c0_71 = arith.constant 0 : index
    %62 = vector.load %arg7[%c2_69, %c0_70, %c0_71] : memref<4x64x16xbf16, #tpu.memory_space<vmem>>, vector<1x64x16xbf16>
    %63 = vector.shape_cast %62 : vector<1x64x16xbf16> to vector<64x16xbf16>
    %cst_72 = arith.constant dense<0.000000e+00> : vector<32x16xf32>
    %64 = tpu.matmul %5, %63, %cst_72 {dimension_numbers = #tpu.dot_dimension_numbers<[1], [0], [0], [1], [0, 0, 1, 1], [], []>} : vector<32x64xbf16>, vector<64x16xbf16>, vector<32x16xf32> -> vector<32x16xf32>
    %65 = arith.truncf %64 : vector<32x16xf32> to vector<32x16xbf16>
    %c0_73 = arith.constant 0 : index
    %c2_74 = arith.constant 2 : index
    %c0_75 = arith.constant 0 : index
    %c0_76 = arith.constant 0 : index
    %66 = vector.load %arg10[%c0_73, %c2_74, %c0_75, %c0_76] : memref<1x4x32x16xbf16, #tpu.memory_space<vmem>>, vector<1x1x32x16xbf16>
    %67 = vector.shape_cast %66 : vector<1x1x32x16xbf16> to vector<32x16xbf16>
    %68 = vector.shape_cast %65 : vector<32x16xbf16> to vector<1x1x32x16xbf16>
    tpu.vector_store %arg10[%c0_73, %c2_74, %c0_75, %c0_76], %68 {strides = array<i32>} : memref<1x4x32x16xbf16, #tpu.memory_space<vmem>>, vector<1x1x32x16xbf16>,
    %c3 = arith.constant 3 : index
    %c0_77 = arith.constant 0 : index
    %c0_78 = arith.constant 0 : index
    %69 = vector.load %arg5[%c3, %c0_77, %c0_78] : memref<4x64x16xbf16, #tpu.memory_space<vmem>>, vector<1x64x16xbf16>
    %70 = vector.shape_cast %69 : vector<1x64x16xbf16> to vector<64x16xbf16>
    %cst_79 = arith.constant dense<0.000000e+00> : vector<32x16xf32>
    %71 = tpu.matmul %1, %70, %cst_79 {dimension_numbers = #tpu.dot_dimension_numbers<[1], [0], [0], [1], [0, 0, 1, 1], [], []>} : vector<32x64xbf16>, vector<64x16xbf16>, vector<32x16xf32> -> vector<32x16xf32>
    %72 = arith.truncf %71 : vector<32x16xf32> to vector<32x16xbf16>
    %c0_80 = arith.constant 0 : index
    %c3_81 = arith.constant 3 : index
    %c0_82 = arith.constant 0 : index
    %c0_83 = arith.constant 0 : index
    %73 = vector.load %arg8[%c0_80, %c3_81, %c0_82, %c0_83] : memref<1x4x32x16xbf16, #tpu.memory_space<vmem>>, vector<1x1x32x16xbf16>
    %74 = vector.shape_cast %73 : vector<1x1x32x16xbf16> to vector<32x16xbf16>
    %75 = vector.shape_cast %72 : vector<32x16xbf16> to vector<1x1x32x16xbf16>
    tpu.vector_store %arg8[%c0_80, %c3_81, %c0_82, %c0_83], %75 {strides = array<i32>} : memref<1x4x32x16xbf16, #tpu.memory_space<vmem>>, vector<1x1x32x16xbf16>,
    %c3_84 = arith.constant 3 : index
    %c0_85 = arith.constant 0 : index
    %c0_86 = arith.constant 0 : index
    %76 = vector.load %arg6[%c3_84, %c0_85, %c0_86] : memref<4x64x16xbf16, #tpu.memory_space<vmem>>, vector<1x64x16xbf16>
    %77 = vector.shape_cast %76 : vector<1x64x16xbf16> to vector<64x16xbf16>
    %cst_87 = arith.constant dense<0.000000e+00> : vector<32x16xf32>
    %78 = tpu.matmul %3, %77, %cst_87 {dimension_numbers = #tpu.dot_dimension_numbers<[1], [0], [0], [1], [0, 0, 1, 1], [], []>} : vector<32x64xbf16>, vector<64x16xbf16>, vector<32x16xf32> -> vector<32x16xf32>
    %79 = arith.truncf %78 : vector<32x16xf32> to vector<32x16xbf16>
    %c0_88 = arith.constant 0 : index
    %c3_89 = arith.constant 3 : index
    %c0_90 = arith.constant 0 : index
    %c0_91 = arith.constant 0 : index
    %80 = vector.load %arg9[%c0_88, %c3_89, %c0_90, %c0_91] : memref<1x4x32x16xbf16, #tpu.memory_space<vmem>>, vector<1x1x32x16xbf16>
    %81 = vector.shape_cast %80 : vector<1x1x32x16xbf16> to vector<32x16xbf16>
    %82 = vector.shape_cast %79 : vector<32x16xbf16> to vector<1x1x32x16xbf16>
    tpu.vector_store %arg9[%c0_88, %c3_89, %c0_90, %c0_91], %82 {strides = array<i32>} : memref<1x4x32x16xbf16, #tpu.memory_space<vmem>>, vector<1x1x32x16xbf16>,
    %c3_92 = arith.constant 3 : index
    %c0_93 = arith.constant 0 : index
    %c0_94 = arith.constant 0 : index
    %83 = vector.load %arg7[%c3_92, %c0_93, %c0_94] : memref<4x64x16xbf16, #tpu.memory_space<vmem>>, vector<1x64x16xbf16>
    %84 = vector.shape_cast %83 : vector<1x64x16xbf16> to vector<64x16xbf16>
    %cst_95 = arith.constant dense<0.000000e+00> : vector<32x16xf32>
    %85 = tpu.matmul %5, %84, %cst_95 {dimension_numbers = #tpu.dot_dimension_numbers<[1], [0], [0], [1], [0, 0, 1, 1], [], []>} : vector<32x64xbf16>, vector<64x16xbf16>, vector<32x16xf32> -> vector<32x16xf32>
    %86 = arith.truncf %85 : vector<32x16xf32> to vector<32x16xbf16>
    %c0_96 = arith.constant 0 : index
    %c3_97 = arith.constant 3 : index
    %c0_98 = arith.constant 0 : index
    %c0_99 = arith.constant 0 : index
    %87 = vector.load %arg10[%c0_96, %c3_97, %c0_98, %c0_99] : memref<1x4x32x16xbf16, #tpu.memory_space<vmem>>, vector<1x1x32x16xbf16>
    %88 = vector.shape_cast %87 : vector<1x1x32x16xbf16> to vector<32x16xbf16>
    %89 = vector.shape_cast %86 : vector<32x16xbf16> to vector<1x1x32x16xbf16>
    tpu.vector_store %arg10[%c0_96, %c3_97, %c0_98, %c0_99], %89 {strides = array<i32>} : memref<1x4x32x16xbf16, #tpu.memory_space<vmem>>, vector<1x1x32x16xbf16>,
    return
  }
  func.func @transform_0(%arg0: i32, %arg1: i32) -> (i32, i32, i32) {
    %c0_i32 = arith.constant 0 : i32
    %c0_i32_0 = arith.constant 0 : i32
    return %arg0, %arg1, %c0_i32 : i32, i32, i32
  }
  func.func @transform_1(%arg0: i32, %arg1: i32) -> (i32, i32, i32) {
    %c0_i32 = arith.constant 0 : i32
    %c0_i32_0 = arith.constant 0 : i32
    return %arg0, %arg1, %c0_i32 : i32, i32, i32
  }
  func.func @transform_2(%arg0: i32, %arg1: i32) -> (i32, i32, i32) {
    %c0_i32 = arith.constant 0 : i32
    %c0_i32_0 = arith.constant 0 : i32
    return %arg0, %arg1, %c0_i32 : i32, i32, i32
  }
  func.func @transform_3(%arg0: i32, %arg1: i32) -> (i32, i32, i32) {
    %c0_i32 = arith.constant 0 : i32
    %c0_i32_0 = arith.constant 0 : i32
    %c0_i32_1 = arith.constant 0 : i32
    %c0_i32_2 = arith.constant 0 : i32
    return %c0_i32, %c0_i32_0, %c0_i32_1 : i32, i32, i32
  }
  func.func @transform_4(%arg0: i32, %arg1: i32) -> (i32, i32, i32) {
    %c0_i32 = arith.constant 0 : i32
    %c0_i32_0 = arith.constant 0 : i32
    %c0_i32_1 = arith.constant 0 : i32
    %c0_i32_2 = arith.constant 0 : i32
    return %c0_i32, %c0_i32_0, %c0_i32_1 : i32, i32, i32
  }
  func.func @transform_5(%arg0: i32, %arg1: i32) -> (i32, i32, i32) {
    %c0_i32 = arith.constant 0 : i32
    %c0_i32_0 = arith.constant 0 : i32
    %c0_i32_1 = arith.constant 0 : i32
    %c0_i32_2 = arith.constant 0 : i32
    return %c0_i32, %c0_i32_0, %c0_i32_1 : i32, i32, i32
  }
  func.func @transform_6(%arg0: i32, %arg1: i32) -> (i32, i32, i32, i32) {
    %c0_i32 = arith.constant 0 : i32
    %c0_i32_0 = arith.constant 0 : i32
    %c0_i32_1 = arith.constant 0 : i32
    return %arg0, %c0_i32, %arg1, %c0_i32_0 : i32, i32, i32, i32
  }
  func.func @transform_7(%arg0: i32, %arg1: i32) -> (i32, i32, i32, i32) {
    %c0_i32 = arith.constant 0 : i32
    %c0_i32_0 = arith.constant 0 : i32
    %c0_i32_1 = arith.constant 0 : i32
    return %arg0, %c0_i32, %arg1, %c0_i32_0 : i32, i32, i32, i32
  }
  func.func @transform_8(%arg0: i32, %arg1: i32) -> (i32, i32, i32, i32) {
    %c0_i32 = arith.constant 0 : i32
    %c0_i32_0 = arith.constant 0 : i32
    %c0_i32_1 = arith.constant 0 : i32
    return %arg0, %c0_i32, %arg1, %c0_i32_0 : i32, i32, i32, i32
  }
}

</mosaic_0001>

<llo_original>
// kernel: tpu_custom_call.1
$region0: #{tpu_custom_call.1}
  #allocation0 [shape = 'u32[]', space=smem, size = 0x4, offset = 0x4, fixed_abs, tag = 'smem constant byte address 0x4 - core index']
  #allocation1 [shape = 'u32[144,128]{1,0:T(1,128)}', space=vmem, size = 0x12000, scoped, tag = 'internal scratch']
  %s0 = inlined_call_operand.vmem [shape: bf16[2,64,64], index: 0, kind: input, shape index: {}]
  %s1 = inlined_call_operand.vmem [shape: bf16[2,64,64], index: 1, kind: input, shape index: {}]
  %s2 = inlined_call_operand.vmem [shape: bf16[2,64,64], index: 2, kind: input, shape index: {}]
  %s3 = inlined_call_operand.vmem [shape: bf16[4,64,16], index: 3, kind: input, shape index: {}]
  %s4 = inlined_call_operand.vmem [shape: bf16[4,64,16], index: 4, kind: input, shape index: {}]
  %s5 = inlined_call_operand.vmem [shape: bf16[4,64,16], index: 5, kind: input, shape index: {}]
  %s6 = inlined_call_operand.vmem [shape: bf16[2,4,64,16], index: 6, kind: output, shape index: {0}]
  %s7 = inlined_call_operand.vmem [shape: bf16[2,4,64,16], index: 7, kind: output, shape index: {1}]
  %s8 = inlined_call_operand.vmem [shape: bf16[2,4,64,16], index: 8, kind: output, shape index: {2}]
  %9 = xla_tuple %s6, %s7, %s8
  %s10 = sld [smem:[#allocation0]]
  $region184: #{tpu_custom_call.1} parent=0
    _
  %s12 = ssub.s32 1, %s10
  %s13 = scalar_select 0, %s12, %s10
  $region1: #{tpu_custom_call.1} parent=0
    #allocation2 [shape = 'u8[65536]{0}', space=vmem, size = 0x10000, scoped, tag = 'output window, operand 0']
    #allocation3 [shape = 'u8[65536]{0}', space=vmem, size = 0x10000, scoped, tag = 'output window, operand 1']
    #allocation4 [shape = 'u8[65536]{0}', space=vmem, size = 0x10000, scoped, tag = 'output window, operand 2']
    loop: start=0, step=1, limit=6
    $region2: #{tpu_custom_call.1} parent=1 // loop_pre_header
      _
    $region3: #{tpu_custom_call.1} parent=1 // loop_header
      %s15 = sphi 0, %s19
      %p16 = scmp.ge.s32.totalorder %s15, 6
      %s22 = sphi 0, %s34
      %s23 = sphi 0, %s30
      %s24 = sphi 0, %s22
      %s25 = sphi 0, %s23
      %s26 = sphi 0, %s24
      %s27 = sphi 0, %s25
      %s39 = sphi 0, %s41
      %s42 = sphi 0, %s39
      %s43 = sphi 0, %s42
      %s59 = sphi 0, %s43
      %s67 = sphi 0, %s69
      %s70 = sphi 0, %s67
      %s71 = sphi 0, %s70
      %s87 = sphi 0, %s71
      %s95 = sphi 0, %s97
      %s98 = sphi 0, %s95
      %s99 = sphi 0, %s98
      %s115 = sphi 0, %s99
      %s119 = sphi 0, %s119
      %s121 = sphi 0, %s119
      %s122 = sphi 0, %s121
      %s136 = sphi 0, %s122
      %s140 = sphi 0, %s140
      %s142 = sphi 0, %s140
      %s143 = sphi 0, %s142
      %s157 = sphi 0, %s143
      %s161 = sphi 0, %s161
      %s163 = sphi 0, %s161
      %s164 = sphi 0, %s163
      %s178 = sphi 0, %s164
      %s186 = sphi 0, %s188
      %s189 = sphi 0, %s186
      %s190 = sphi 0, %s189
      %s206 = sphi 0, %s190
      %s214 = sphi 0, %s216
      %s217 = sphi 0, %s214
      %s218 = sphi 0, %s217
      %s234 = sphi 0, %s218
      %s242 = sphi 0, %s244
      %s245 = sphi 0, %s242
      %s246 = sphi 0, %s245
      %s262 = sphi 0, %s246
    $region4: #{tpu_custom_call.1} parent=1 // loop_header_branch
      %18 = sbr.rel (%p16) target = $region8
    $region5: #{tpu_custom_call.1} parent=1 // loop_body
      %s20 = ssub.s32 %s15, 1
      %s21 = ssub.s32 %s15, 2
      %s28 = sadd.s32 1, %s23
      %p29 = scmp.ge.s32.totalorder %s28, 2
      %s30 = scalar_select %p29, 0, %s28
      %s31 = sadd.s32 1, %s22
      %s32 = scalar_select %p29, %s31, %s22
      %p33 = scmp.ge.s32.totalorder %s32, 2
      %s34 = scalar_select %p33, 0, %s32
      %s35 = ssub.s32 %s22, %s34
      %s36 = ssub.s32 %s23, %s30
      %s37 = sor.u32 %s35, %s36
      %p38 = scmp.eq.s32.totalorder %s37, 0
      %s40 = sadd.s32 %s39, 1
      %s41 = scalar_select %p38, %s39, %s40
      %p44 = pneg %p38
      %p45 = scmp.eq.s32.totalorder %s15, 3
      %p46 = por %p44, %p45
      %p47 = scmp.ne.s32.totalorder %s39, %s42
      %p48 = scmp.eq.s32.totalorder %s15, 0
      %p49 = por %p47, %p48
      %p50 = scmp.ne.s32.totalorder %s39, %s42
      %p51 = scmp.eq.s32.totalorder %s20, 3
      %p52 = por %p50, %p51
      %p53 = scmp.ne.s32.totalorder %s42, %s43
      %p54 = scmp.eq.s32.totalorder %s20, 0
      %p55 = por %p53, %p54
      %p56 = scmp.ne.s32.totalorder %s42, %s43
      %p57 = scmp.eq.s32.totalorder %s21, 3
      %p58 = por %p56, %p57
      %p60 = scmp.ne.s32.totalorder %s43, %s59
      %p61 = scmp.eq.s32.totalorder %s21, 0
      %p62 = por %p60, %p61
      %s63 = ssub.s32 %s22, %s34
      %s64 = ssub.s32 %s23, %s30
      %s65 = sor.u32 %s63, %s64
      %p66 = scmp.eq.s32.totalorder %s65, 0
      %s68 = sadd.s32 %s67, 1
      %s69 = scalar_select %p66, %s67, %s68
      %p72 = pneg %p66
      %p73 = scmp.eq.s32.totalorder %s15, 3
      %p74 = por %p72, %p73
      %p75 = scmp.ne.s32.totalorder %s67, %s70
      %p76 = scmp.eq.s32.totalorder %s15, 0
      %p77 = por %p75, %p76
      %p78 = scmp.ne.s32.totalorder %s67, %s70
      %p79 = scmp.eq.s32.totalorder %s20, 3
      %p80 = por %p78, %p79
      %p81 = scmp.ne.s32.totalorder %s70, %s71
      %p82 = scmp.eq.s32.totalorder %s20, 0
      %p83 = por %p81, %p82
      %p84 = scmp.ne.s32.totalorder %s70, %s71
      %p85 = scmp.eq.s32.totalorder %s21, 3
      %p86 = por %p84, %p85
      %p88 = scmp.ne.s32.totalorder %s71, %s87
      %p89 = scmp.eq.s32.totalorder %s21, 0
      %p90 = por %p88, %p89
      %s91 = ssub.s32 %s22, %s34
      %s92 = ssub.s32 %s23, %s30
      %s93 = sor.u32 %s91, %s92
      %p94 = scmp.eq.s32.totalorder %s93, 0
      %s96 = sadd.s32 %s95, 1
      %s97 = scalar_select %p94, %s95, %s96
      %p100 = pneg %p94
      %p101 = scmp.eq.s32.totalorder %s15, 3
      %p102 = por %p100, %p101
      %p103 = scmp.ne.s32.totalorder %s95, %s98
      %p104 = scmp.eq.s32.totalorder %s15, 0
      %p105 = por %p103, %p104
      %p106 = scmp.ne.s32.totalorder %s95, %s98
      %p107 = scmp.eq.s32.totalorder %s20, 3
      %p108 = por %p106, %p107
      %p109 = scmp.ne.s32.totalorder %s98, %s99
      %p110 = scmp.eq.s32.totalorder %s20, 0
      %p111 = por %p109, %p110
      %p112 = scmp.ne.s32.totalorder %s98, %s99
      %p113 = scmp.eq.s32.totalorder %s21, 3
      %p114 = por %p112, %p113
      %p116 = scmp.ne.s32.totalorder %s99, %s115
      %p117 = scmp.eq.s32.totalorder %s21, 0
      %p118 = por %p116, %p117
      %s120 = sadd.s32 %s119, 1
      %p123 = scmp.eq.s32.totalorder %s15, 3
      %p124 = scmp.ne.s32.totalorder %s119, %s121
      %p125 = scmp.eq.s32.totalorder %s15, 0
      %p126 = por %p124, %p125
      %p127 = scmp.ne.s32.totalorder %s119, %s121
      %p128 = scmp.eq.s32.totalorder %s20, 3
      %p129 = por %p127, %p128
      %p130 = scmp.ne.s32.totalorder %s121, %s122
      %p131 = scmp.eq.s32.totalorder %s20, 0
      %p132 = por %p130, %p131
      %p133 = scmp.ne.s32.totalorder %s121, %s122
      %p134 = scmp.eq.s32.totalorder %s21, 3
      %p135 = por %p133, %p134
      %p137 = scmp.ne.s32.totalorder %s122, %s136
      %p138 = scmp.eq.s32.totalorder %s21, 0
      %p139 = por %p137, %p138
      %s141 = sadd.s32 %s140, 1
      %p144 = scmp.eq.s32.totalorder %s15, 3
      %p145 = scmp.ne.s32.totalorder %s140, %s142
      %p146 = scmp.eq.s32.totalorder %s15, 0
      %p147 = por %p145, %p146
      %p148 = scmp.ne.s32.totalorder %s140, %s142
      %p149 = scmp.eq.s32.totalorder %s20, 3
      %p150 = por %p148, %p149
      %p151 = scmp.ne.s32.totalorder %s142, %s143
      %p152 = scmp.eq.s32.totalorder %s20, 0
      %p153 = por %p151, %p152
      %p154 = scmp.ne.s32.totalorder %s142, %s143
      %p155 = scmp.eq.s32.totalorder %s21, 3
      %p156 = por %p154, %p155
      %p158 = scmp.ne.s32.totalorder %s143, %s157
      %p159 = scmp.eq.s32.totalorder %s21, 0
      %p160 = por %p158, %p159
      %s162 = sadd.s32 %s161, 1
      %p165 = scmp.eq.s32.totalorder %s15, 3
      %p166 = scmp.ne.s32.totalorder %s161, %s163
      %p167 = scmp.eq.s32.totalorder %s15, 0
      %p168 = por %p166, %p167
      %p169 = scmp.ne.s32.totalorder %s161, %s163
      %p170 = scmp.eq.s32.totalorder %s20, 3
      %p171 = por %p169, %p170
      %p172 = scmp.ne.s32.totalorder %s163, %s164
      %p173 = scmp.eq.s32.totalorder %s20, 0
      %p174 = por %p172, %p173
      %p175 = scmp.ne.s32.totalorder %s163, %s164
      %p176 = scmp.eq.s32.totalorder %s21, 3
      %p177 = por %p175, %p176
      %p179 = scmp.ne.s32.totalorder %s164, %s178
      %p180 = scmp.eq.s32.totalorder %s21, 0
      %p181 = por %p179, %p180
      %s182 = ssub.s32 %s22, %s34
      %s183 = ssub.s32 %s23, %s30
      %s184 = sor.u32 %s182, %s183
      %p185 = scmp.eq.s32.totalorder %s184, 0
      %s187 = sadd.s32 %s186, 1
      %s188 = scalar_select %p185, %s186, %s187
      %p191 = pneg %p185
      %p192 = scmp.eq.s32.totalorder %s15, 3
      %p193 = por %p191, %p192
      %p194 = scmp.ne.s32.totalorder %s186, %s189
      %p195 = scmp.eq.s32.totalorder %s15, 0
      %p196 = por %p194, %p195
      %p197 = scmp.ne.s32.totalorder %s186, %s189
      %p198 = scmp.eq.s32.totalorder %s20, 3
      %p199 = por %p197, %p198
      %p200 = scmp.ne.s32.totalorder %s189, %s190
      %p201 = scmp.eq.s32.totalorder %s20, 0
      %p202 = por %p200, %p201
      %p203 = scmp.ne.s32.totalorder %s189, %s190
      %p204 = scmp.eq.s32.totalorder %s21, 3
      %p205 = por %p203, %p204
      %p207 = scmp.ne.s32.totalorder %s190, %s206
      %p208 = scmp.eq.s32.totalorder %s21, 0
      %p209 = por %p207, %p208
      %s210 = ssub.s32 %s22, %s34
      %s211 = ssub.s32 %s23, %s30
      %s212 = sor.u32 %s210, %s211
      %p213 = scmp.eq.s32.totalorder %s212, 0
      %s215 = sadd.s32 %s214, 1
      %s216 = scalar_select %p213, %s214, %s215
      %p219 = pneg %p213
      %p220 = scmp.eq.s32.totalorder %s15, 3
      %p221 = por %p219, %p220
      %p222 = scmp.ne.s32.totalorder %s214, %s217
      %p223 = scmp.eq.s32.totalorder %s15, 0
      %p224 = por %p222, %p223
      %p225 = scmp.ne.s32.totalorder %s214, %s217
      %p226 = scmp.eq.s32.totalorder %s20, 3
      %p227 = por %p225, %p226
      %p228 = scmp.ne.s32.totalorder %s217, %s218
      %p229 = scmp.eq.s32.totalorder %s20, 0
      %p230 = por %p228, %p229
      %p231 = scmp.ne.s32.totalorder %s217, %s218
      %p232 = scmp.eq.s32.totalorder %s21, 3
      %p233 = por %p231, %p232
      %p235 = scmp.ne.s32.totalorder %s218, %s234
      %p236 = scmp.eq.s32.totalorder %s21, 0
      %p237 = por %p235, %p236
      %s238 = ssub.s32 %s22, %s34
      %s239 = ssub.s32 %s23, %s30
      %s240 = sor.u32 %s238, %s239
      %p241 = scmp.eq.s32.totalorder %s240, 0
      %s243 = sadd.s32 %s242, 1
      %s244 = scalar_select %p241, %s242, %s243
      %p247 = pneg %p241
      %p248 = scmp.eq.s32.totalorder %s15, 3
      %p249 = por %p247, %p248
      %p250 = scmp.ne.s32.totalorder %s242, %s245
      %p251 = scmp.eq.s32.totalorder %s15, 0
      %p252 = por %p250, %p251
      %p253 = scmp.ne.s32.totalorder %s242, %s245
      %p254 = scmp.eq.s32.totalorder %s20, 3
      %p255 = por %p253, %p254
      %p256 = scmp.ne.s32.totalorder %s245, %s246
      %p257 = scmp.eq.s32.totalorder %s20, 0
      %p258 = por %p256, %p257
      %p259 = scmp.ne.s32.totalorder %s245, %s246
      %p260 = scmp.eq.s32.totalorder %s21, 3
      %p261 = por %p259, %p260
      %p263 = scmp.ne.s32.totalorder %s246, %s262
      %p264 = scmp.eq.s32.totalorder %s21, 0
      %p265 = por %p263, %p264
      %p266 = scmp.le.s32.totalorder 1, %s15
      %p267 = scmp.lt.s32.totalorder %s15, 5
      %p268 = pnand %p266, %p267
      %p269 = pneg %p268
      // Predicated region
      $region9: #{tpu_custom_call.1} parent=5 // pred_check
        _
      $region10: #{tpu_custom_call.1} parent=5 // pred_check_branch
        %271 = sbr.rel (%p268) target = $region12
      $region11: #{tpu_custom_call.1} parent=5 // pred_region
        %s272 = ssub.s32 %s15, 1
        // Predicated region
        $region13: #{tpu_custom_call.1} parent=11 // pred_check
          %p273 = pneg %p132
        $region14: #{tpu_custom_call.1} parent=11 // pred_check_branch
          %275 = sbr.rel (%p273) target = $region16
        $region15: #{tpu_custom_call.1} parent=11 // pred_region
          _
        $region16: #{tpu_custom_call.1} parent=11 // pred_fallthru
          _
        // Predicated region
        $region17: #{tpu_custom_call.1} parent=11 // pred_check
          %p276 = pneg %p153
        $region18: #{tpu_custom_call.1} parent=11 // pred_check_branch
          %278 = sbr.rel (%p276) target = $region20
        $region19: #{tpu_custom_call.1} parent=11 // pred_region
          _
        $region20: #{tpu_custom_call.1} parent=11 // pred_fallthru
          _
        // Predicated region
        $region21: #{tpu_custom_call.1} parent=11 // pred_check
          %p279 = pneg %p174
        $region22: #{tpu_custom_call.1} parent=11 // pred_check_branch
          %281 = sbr.rel (%p279) target = $region24
        $region23: #{tpu_custom_call.1} parent=11 // pred_region
          _
        $region24: #{tpu_custom_call.1} parent=11 // pred_fallthru
          _
      $region12: #{tpu_custom_call.1} parent=5 // pred_fallthru
        _
      %p282 = scmp.lt.s32.totalorder %s15, 4
      // Predicated region
      $region25: #{tpu_custom_call.1} parent=5 // pred_check
        %p283 = pneg %p282
      $region26: #{tpu_custom_call.1} parent=5 // pred_check_branch
        %285 = sbr.rel (%p283) target = $region28
      $region27: #{tpu_custom_call.1} parent=5 // pred_region
        // Predicated region
        $region29: #{tpu_custom_call.1} parent=27 // pred_check
          %p286 = pneg %p49
        $region30: #{tpu_custom_call.1} parent=27 // pred_check_branch
          %288 = sbr.rel (%p286) target = $region32
        $region31: #{tpu_custom_call.1} parent=27 // pred_region
          %s289 = smul.u32 4, %s23
          %p290 = scmp.lt.s32.totalorder %s22, 1
          %s291 = scalar_select %p290, %s22, 1
          %p292 = scmp.lt.s32.totalorder %s289, 7
          %s293 = scalar_select %p292, %s289, 7
          %s294 = smul.addr %s291, 8
          %s295 = sadd.s32 %s293, %s294
          %s296 = smul.addr %s295, 4
          %s297 = scalar_lea.vmem %s0, %s296
          %s298 = smul.u32 4, %s23
        $region32: #{tpu_custom_call.1} parent=27 // pred_fallthru
          _
        // Predicated region
        $region33: #{tpu_custom_call.1} parent=27 // pred_check
          %p299 = pneg %p77
        $region34: #{tpu_custom_call.1} parent=27 // pred_check_branch
          %301 = sbr.rel (%p299) target = $region36
        $region35: #{tpu_custom_call.1} parent=27 // pred_region
          %s302 = smul.u32 4, %s23
          %p303 = scmp.lt.s32.totalorder %s22, 1
          %s304 = scalar_select %p303, %s22, 1
          %p305 = scmp.lt.s32.totalorder %s302, 7
          %s306 = scalar_select %p305, %s302, 7
          %s307 = smul.addr %s304, 8
          %s308 = sadd.s32 %s306, %s307
          %s309 = smul.addr %s308, 4
          %s310 = scalar_lea.vmem %s1, %s309
          %s311 = smul.u32 4, %s23
        $region36: #{tpu_custom_call.1} parent=27 // pred_fallthru
          _
        // Predicated region
        $region37: #{tpu_custom_call.1} parent=27 // pred_check
          %p312 = pneg %p105
        $region38: #{tpu_custom_call.1} parent=27 // pred_check_branch
          %314 = sbr.rel (%p312) target = $region40
        $region39: #{tpu_custom_call.1} parent=27 // pred_region
          %s315 = smul.u32 4, %s23
          %p316 = scmp.lt.s32.totalorder %s22, 1
          %s317 = scalar_select %p316, %s22, 1
          %p318 = scmp.lt.s32.totalorder %s315, 7
          %s319 = scalar_select %p318, %s315, 7
          %s320 = smul.addr %s317, 8
          %s321 = sadd.s32 %s319, %s320
          %s322 = smul.addr %s321, 4
          %s323 = scalar_lea.vmem %s2, %s322
          %s324 = smul.u32 4, %s23
        $region40: #{tpu_custom_call.1} parent=27 // pred_fallthru
          _
      $region28: #{tpu_custom_call.1} parent=5 // pred_fallthru
        _
      %p325 = scmp.le.s32.totalorder 1, %s15
      %p326 = scmp.lt.s32.totalorder %s15, 5
      %p327 = pnand %p325, %p326
      %p328 = pneg %p327
      // Predicated region
      $region41: #{tpu_custom_call.1} parent=5 // pred_check
        _
      $region42: #{tpu_custom_call.1} parent=5 // pred_check_branch
        %330 = sbr.rel (%p327) target = $region44
      $region43: #{tpu_custom_call.1} parent=5 // pred_region
        %s331 = ssub.s32 %s15, 1
        %s332 = smul.u32 4, %s25
        %p333 = scmp.lt.s32.totalorder %s24, 1
        %s334 = scalar_select %p333, %s24, 1
        %p335 = scmp.lt.s32.totalorder %s332, 7
        %s336 = scalar_select %p335, %s332, 7
        %s337 = smul.addr %s334, 8
        %s338 = sadd.s32 %s336, %s337
        %s339 = smul.addr %s338, 4
        %s340 = scalar_lea.vmem %s0, %s339
        %p341 = pneg %p55
        %p342 = pneg %p52
        %s343 = smul.u32 4, %s25
        %p344 = scmp.lt.s32.totalorder %s24, 1
        %s345 = scalar_select %p344, %s24, 1
        %p346 = scmp.lt.s32.totalorder %s343, 7
        %s347 = scalar_select %p346, %s343, 7
        %s348 = smul.addr %s345, 8
        %s349 = sadd.s32 %s347, %s348
        %s350 = smul.addr %s349, 4
        %s351 = scalar_lea.vmem %s1, %s350
        %p352 = pneg %p83
        %p353 = pneg %p80
        %s354 = smul.u32 4, %s25
        %p355 = scmp.lt.s32.totalorder %s24, 1
        %s356 = scalar_select %p355, %s24, 1
        %p357 = scmp.lt.s32.totalorder %s354, 7
        %s358 = scalar_select %p357, %s354, 7
        %s359 = smul.addr %s356, 8
        %s360 = sadd.s32 %s358, %s359
        %s361 = smul.addr %s360, 4
        %s362 = scalar_lea.vmem %s2, %s361
        %p363 = pneg %p111
        %p364 = pneg %p108
        %p365 = pneg %p132
        %p366 = pneg %p129
        %p367 = pneg %p153
        %p368 = pneg %p150
        %p369 = pneg %p174
        %p370 = pneg %p171
        %p371 = pneg %p202
        %p372 = pneg %p199
        %s373 = sand.u32 %s189, 1
        %s374 = sand.u32 %s189, 1
        %s375 = smul.addr %s374, 64
        %s376 = scalar_lea.vmem [#allocation2], %s375
        %p377 = pneg %p230
        %p378 = pneg %p227
        %s379 = sand.u32 %s217, 1
        %s380 = sand.u32 %s217, 1
        %s381 = smul.addr %s380, 64
        %s382 = scalar_lea.vmem [#allocation3], %s381
        %p383 = pneg %p258
        %p384 = pneg %p255
        %s385 = sand.u32 %s245, 1
        %s386 = sand.u32 %s245, 1
        %s387 = smul.addr %s386, 64
        %s388 = scalar_lea.vmem [#allocation4], %s387
        %s389 = smul.u32 4, %s25
        %p390 = scmp.lt.s32.totalorder %s24, 1
        %s391 = scalar_select %p390, %s24, 1
        %p392 = scmp.lt.s32.totalorder %s389, 7
        %s393 = scalar_select %p392, %s389, 7
        %s394 = smul.addr %s391, 8
        %s395 = sadd.s32 %s393, %s394
        %s396 = smul.addr %s395, 4
        %s397 = scalar_lea.vmem %s0, %s396
        %s398 = smul.u32 4, %s25
        %s399 = smul.u32 4, %s25
        %p400 = scmp.lt.s32.totalorder %s24, 1
        %s401 = scalar_select %p400, %s24, 1
        %p402 = scmp.lt.s32.totalorder %s399, 7
        %s403 = scalar_select %p402, %s399, 7
        %s404 = smul.addr %s401, 8
        %s405 = sadd.s32 %s403, %s404
        %s406 = smul.addr %s405, 4
        %s407 = scalar_lea.vmem %s1, %s406
        %s408 = smul.u32 4, %s25
        %s409 = smul.u32 4, %s25
        %p410 = scmp.lt.s32.totalorder %s24, 1
        %s411 = scalar_select %p410, %s24, 1
        %p412 = scmp.lt.s32.totalorder %s409, 7
        %s413 = scalar_select %p412, %s409, 7
        %s414 = smul.addr %s411, 8
        %s415 = sadd.s32 %s413, %s414
        %s416 = smul.addr %s415, 4
        %s417 = scalar_lea.vmem %s2, %s416
        %s418 = smul.u32 4, %s25
        %s419 = smul.u32 4, %s25
        %s420 = smul.u32 4, %s25
        %s421 = smul.u32 4, %s25
        %v423 = vld [vmem:[%s397] sm:$0xf]
        %v424 = vld [vmem:[%s397 + $0x4] sm:$0xf]
        %v425 = vld [vmem:[%s397 + $0x8] sm:$0xf]
        %v426 = vld [vmem:[%s397 + $0xc] sm:$0xf]
        %v427 = vld [vmem:[%s407] sm:$0xf]
        %v428 = vld [vmem:[%s407 + $0x4] sm:$0xf]
        %v429 = vld [vmem:[%s407 + $0x8] sm:$0xf]
        %v430 = vld [vmem:[%s407 + $0xc] sm:$0xf]
        %v431 = vld [vmem:[%s417] sm:$0xf]
        %v432 = vld [vmem:[%s417 + $0x4] sm:$0xf]
        %v433 = vld [vmem:[%s417 + $0x8] sm:$0xf]
        %v434 = vld [vmem:[%s417 + $0xc] sm:$0xf]
        %v435 = vld [vmem:[%s3] sm:$0xf]
        %v436 = vld [vmem:[%s3 + $0x4] sm:$0xf]
        %v437 = vld [vmem:[%s3 + $0x8] sm:$0xf]
        %v438 = vld [vmem:[%s3 + $0xc] sm:$0xf]
        %v439 = vld [vmem:[%s3 + $0x10] sm:$0xf]
        %v440 = vld [vmem:[%s3 + $0x14] sm:$0xf]
        %v441 = vld [vmem:[%s3 + $0x18] sm:$0xf]
        %v442 = vld [vmem:[%s3 + $0x1c] sm:$0xf]
        %v447 = vunpack.c.l.b16 %v423
        %v448 = vunpack.c.l.b16 %v424
        %v449 = vunpack.c.l.b16 %v425
        %v450 = vunpack.c.l.b16 %v426
        %v451 = vpack.c.b16 %v448, %v447
        %v452 = vpack.c.b16 %v450, %v449
        %v461 = vunpack.c.l.b16 %v435
        %v462 = vunpack.c.l.b16 %v436
        %v463 = vunpack.c.l.b16 %v437
        %v464 = vunpack.c.l.b16 %v438
        %v465 = vunpack.c.l.b16 %v439
        %v466 = vunpack.c.l.b16 %v440
        %v467 = vunpack.c.l.b16 %v441
        %v468 = vunpack.c.l.b16 %v442
        %v469 = vpack.c.b16 %v462, %v461
        %v470 = vpack.c.b16 %v464, %v463
        %v471 = vpack.c.b16 %v466, %v465
        %v472 = vpack.c.b16 %v468, %v467
        %vm477 = vcmask 523264
        %v479 = vsel %vm477, %v451, 0
        %v482 = vsel %vm477, %v452, 0
        %484 = vmatprep.subr.bf16.mxu0 0
        %485 = vmatpush1.bf16.msra.mxu0 0
        %486 = vmatprep.subr.bf16.mxu0 0
        %487 = vmatpush1.bf16.msra.mxu0 0
        %488 = vmatprep.subr.bf16.mxu0 0
        %489 = vmatpush1.bf16.msra.mxu0 0
        %490 = vmatprep.subr.bf16.mxu0 0
        %491 = vmatpush1.bf16.msra.mxu0 0
        %492 = vmatprep.subr.bf16.mxu0 0
        %493 = vmatpush1.bf16.msra.mxu0 %v472
        %494 = vmatprep.subr.bf16.mxu0 0
        %495 = vmatpush1.bf16.msra.mxu0 %v471
        %496 = vmatprep.subr.bf16.mxu0 0
        %497 = vmatpush1.bf16.msra.mxu0 %v470
        %498 = vmatprep.subr.bf16.mxu0 0
        %499 = vmatpush1.bf16.msra.mxu0 %v469
        %500 = vmatprep.subr.bf16.mxu0 0
        %501 = vmatpush2.bf16.msra.mxu0 0
        %502 = vmatprep.subr.bf16.mxu0 0
        %503 = vmatpush2.bf16.msra.mxu0 0
        %504 = vmatprep.subr.bf16.mxu0 0
        %505 = vmatpush2.bf16.msra.mxu0 0
        %506 = vmatprep.subr.bf16.mxu0 0
        %507 = vmatpush2.bf16.msra.mxu0 0
        %508 = vmatprep.subr.bf16.mxu0 0
        %509 = vmatpush2.bf16.msra.mxu0 0
        %510 = vmatprep.subr.bf16.mxu0 0
        %511 = vmatpush2.bf16.msra.mxu0 0
        %512 = vmatprep.subr.bf16.mxu0 0
        %513 = vmatpush2.bf16.msra.mxu0 0
        %514 = vmatprep.subr.bf16.mxu0 0
        %515 = vmatpush2.bf16.msra.mxu0 0
        %516 = vmatprep.mubr.bf16.mxu0 0
        %517 = vmatmul.mubr.bf16.gmra.mxu0 %v479
        %v518 = vpop.f32.mrf.mxu0
        %v519 = vadd.f32 0.0, %v518
        %v520 = vpop.f32.mrf.mxu0
        %v521 = vpop.f32.mrf.mxu0
        %v522 = vadd.f32 0.0, %v521
        %v523 = vpop.f32.mrf.mxu0
        %524 = vmatprep.mubr.bf16.mxu0 0
        %525 = vmatmul.mubr.bf16.gmra.mxu0 %v482
        %v526 = vpop.f32.mrf.mxu0
        %v527 = vadd.f32 0.0, %v526
        %v528 = vpop.f32.mrf.mxu0
        %v529 = vpop.f32.mrf.mxu0
        %v530 = vadd.f32 0.0, %v529
        %v531 = vpop.f32.mrf.mxu0
        %532 = vdwg.mxu0
        %v533 = vpack.c.bf16 %v522, %v519
        %v534 = vpack.c.bf16 %v530, %v527
        %v537 = vunpack.c.l.b16 %v533
        %v538 = vunpack.c.h.b16 %v533
        %v539 = vunpack.c.l.b16 %v534
        %v540 = vunpack.c.h.b16 %v534
        %v541 = vpack.c.b16 %v537, %v537
        %v542 = vpack.c.b16 %v538, %v538
        %v543 = vpack.c.b16 %v539, %v539
        %v544 = vpack.c.b16 %v540, %v540
        %vm549 = vcmask 125952
        %550 = vst.msk [vmem:[%s376] sm:$0xf] %vm549, %v541
        %551 = vst.msk [vmem:[%s376 + $0x4] sm:$0xf] %vm549, %v542
        %552 = vst.msk [vmem:[%s376 + $0x8] sm:$0xf] %vm549, %v543
        %553 = vst.msk [vmem:[%s376 + $0xc] sm:$0xf] %vm549, %v544
        %v554 = vld [vmem:[%s4] sm:$0xf]
        %v555 = vld [vmem:[%s4 + $0x4] sm:$0xf]
        %v556 = vld [vmem:[%s4 + $0x8] sm:$0xf]
        %v557 = vld [vmem:[%s4 + $0xc] sm:$0xf]
        %v558 = vld [vmem:[%s4 + $0x10] sm:$0xf]
        %v559 = vld [vmem:[%s4 + $0x14] sm:$0xf]
        %v560 = vld [vmem:[%s4 + $0x18] sm:$0xf]
        %v561 = vld [vmem:[%s4 + $0x1c] sm:$0xf]
        %v566 = vunpack.c.l.b16 %v427
        %v567 = vunpack.c.l.b16 %v428
        %v568 = vunpack.c.l.b16 %v429
        %v569 = vunpack.c.l.b16 %v430
        %v570 = vpack.c.b16 %v567, %v566
        %v571 = vpack.c.b16 %v569, %v568
        %v580 = vunpack.c.l.b16 %v554
        %v581 = vunpack.c.l.b16 %v555
        %v582 = vunpack.c.l.b16 %v556
        %v583 = vunpack.c.l.b16 %v557
        %v584 = vunpack.c.l.b16 %v558
        %v585 = vunpack.c.l.b16 %v559
        %v586 = vunpack.c.l.b16 %v560
        %v587 = vunpack.c.l.b16 %v561
        %v588 = vpack.c.b16 %v581, %v580
        %v589 = vpack.c.b16 %v583, %v582
        %v590 = vpack.c.b16 %v585, %v584
        %v591 = vpack.c.b16 %v587, %v586
        %v597 = vsel %vm477, %v570, 0
        %v600 = vsel %vm477, %v571, 0
        %602 = vmatprep.subr.bf16.mxu0 0
        %603 = vmatpush1.bf16.msra.mxu0 0
        %604 = vmatprep.subr.bf16.mxu0 0
        %605 = vmatpush1.bf16.msra.mxu0 0
        %606 = vmatprep.subr.bf16.mxu0 0
        %607 = vmatpush1.bf16.msra.mxu0 0
        %608 = vmatprep.subr.bf16.mxu0 0
        %609 = vmatpush1.bf16.msra.mxu0 0
        %610 = vmatprep.subr.bf16.mxu0 0
        %611 = vmatpush1.bf16.msra.mxu0 %v591
        %612 = vmatprep.subr.bf16.mxu0 0
        %613 = vmatpush1.bf16.msra.mxu0 %v590
        %614 = vmatprep.subr.bf16.mxu0 0
        %615 = vmatpush1.bf16.msra.mxu0 %v589
        %616 = vmatprep.subr.bf16.mxu0 0
        %617 = vmatpush1.bf16.msra.mxu0 %v588
        %618 = vmatprep.subr.bf16.mxu0 0
        %619 = vmatpush2.bf16.msra.mxu0 0
        %620 = vmatprep.subr.bf16.mxu0 0
        %621 = vmatpush2.bf16.msra.mxu0 0
        %622 = vmatprep.subr.bf16.mxu0 0
        %623 = vmatpush2.bf16.msra.mxu0 0
        %624 = vmatprep.subr.bf16.mxu0 0
        %625 = vmatpush2.bf16.msra.mxu0 0
        %626 = vmatprep.subr.bf16.mxu0 0
        %627 = vmatpush2.bf16.msra.mxu0 0
        %628 = vmatprep.subr.bf16.mxu0 0
        %629 = vmatpush2.bf16.msra.mxu0 0
        %630 = vmatprep.subr.bf16.mxu0 0
        %631 = vmatpush2.bf16.msra.mxu0 0
        %632 = vmatprep.subr.bf16.mxu0 0
        %633 = vmatpush2.bf16.msra.mxu0 0
        %634 = vmatprep.mubr.bf16.mxu0 0
        %635 = vmatmul.mubr.bf16.gmra.mxu0 %v597
        %v636 = vpop.f32.mrf.mxu0
        %v637 = vadd.f32 0.0, %v636
        %v638 = vpop.f32.mrf.mxu0
        %v639 = vpop.f32.mrf.mxu0
        %v640 = vadd.f32 0.0, %v639
        %v641 = vpop.f32.mrf.mxu0
        %642 = vmatprep.mubr.bf16.mxu0 0
        %643 = vmatmul.mubr.bf16.gmra.mxu0 %v600
        %v644 = vpop.f32.mrf.mxu0
        %v645 = vadd.f32 0.0, %v644
        %v646 = vpop.f32.mrf.mxu0
        %v647 = vpop.f32.mrf.mxu0
        %v648 = vadd.f32 0.0, %v647
        %v649 = vpop.f32.mrf.mxu0
        %650 = vdwg.mxu0
        %v651 = vpack.c.bf16 %v640, %v637
        %v652 = vpack.c.bf16 %v648, %v645
        %v655 = vunpack.c.l.b16 %v651
        %v656 = vunpack.c.h.b16 %v651
        %v657 = vunpack.c.l.b16 %v652
        %v658 = vunpack.c.h.b16 %v652
        %v659 = vpack.c.b16 %v655, %v655
        %v660 = vpack.c.b16 %v656, %v656
        %v661 = vpack.c.b16 %v657, %v657
        %v662 = vpack.c.b16 %v658, %v658
        %667 = vst.msk [vmem:[%s382] sm:$0xf] %vm549, %v659
        %668 = vst.msk [vmem:[%s382 + $0x4] sm:$0xf] %vm549, %v660
        %669 = vst.msk [vmem:[%s382 + $0x8] sm:$0xf] %vm549, %v661
        %670 = vst.msk [vmem:[%s382 + $0xc] sm:$0xf] %vm549, %v662
        %v671 = vld [vmem:[%s5] sm:$0xf]
        %v672 = vld [vmem:[%s5 + $0x4] sm:$0xf]
        %v673 = vld [vmem:[%s5 + $0x8] sm:$0xf]
        %v674 = vld [vmem:[%s5 + $0xc] sm:$0xf]
        %v675 = vld [vmem:[%s5 + $0x10] sm:$0xf]
        %v676 = vld [vmem:[%s5 + $0x14] sm:$0xf]
        %v677 = vld [vmem:[%s5 + $0x18] sm:$0xf]
        %v678 = vld [vmem:[%s5 + $0x1c] sm:$0xf]
        %v683 = vunpack.c.l.b16 %v431
        %v684 = vunpack.c.l.b16 %v432
        %v685 = vunpack.c.l.b16 %v433
        %v686 = vunpack.c.l.b16 %v434
        %v687 = vpack.c.b16 %v684, %v683
        %v688 = vpack.c.b16 %v686, %v685
        %v697 = vunpack.c.l.b16 %v671
        %v698 = vunpack.c.l.b16 %v672
        %v699 = vunpack.c.l.b16 %v673
        %v700 = vunpack.c.l.b16 %v674
        %v701 = vunpack.c.l.b16 %v675
        %v702 = vunpack.c.l.b16 %v676
        %v703 = vunpack.c.l.b16 %v677
        %v704 = vunpack.c.l.b16 %v678
        %v705 = vpack.c.b16 %v698, %v697
        %v706 = vpack.c.b16 %v700, %v699
        %v707 = vpack.c.b16 %v702, %v701
        %v708 = vpack.c.b16 %v704, %v703
        %v714 = vsel %vm477, %v687, 0
        %v717 = vsel %vm477, %v688, 0
        %719 = vmatprep.subr.bf16.mxu0 0
        %720 = vmatpush1.bf16.msra.mxu0 0
        %721 = vmatprep.subr.bf16.mxu0 0
        %722 = vmatpush1.bf16.msra.mxu0 0
        %723 = vmatprep.subr.bf16.mxu0 0
        %724 = vmatpush1.bf16.msra.mxu0 0
        %725 = vmatprep.subr.bf16.mxu0 0
        %726 = vmatpush1.bf16.msra.mxu0 0
        %727 = vmatprep.subr.bf16.mxu0 0
        %728 = vmatpush1.bf16.msra.mxu0 %v708
        %729 = vmatprep.subr.bf16.mxu0 0
        %730 = vmatpush1.bf16.msra.mxu0 %v707
        %731 = vmatprep.subr.bf16.mxu0 0
        %732 = vmatpush1.bf16.msra.mxu0 %v706
        %733 = vmatprep.subr.bf16.mxu0 0
        %734 = vmatpush1.bf16.msra.mxu0 %v705
        %735 = vmatprep.subr.bf16.mxu0 0
        %736 = vmatpush2.bf16.msra.mxu0 0
        %737 = vmatprep.subr.bf16.mxu0 0
        %738 = vmatpush2.bf16.msra.mxu0 0
        %739 = vmatprep.subr.bf16.mxu0 0
        %740 = vmatpush2.bf16.msra.mxu0 0
        %741 = vmatprep.subr.bf16.mxu0 0
        %742 = vmatpush2.bf16.msra.mxu0 0
        %743 = vmatprep.subr.bf16.mxu0 0
        %744 = vmatpush2.bf16.msra.mxu0 0
        %745 = vmatprep.subr.bf16.mxu0 0
        %746 = vmatpush2.bf16.msra.mxu0 0
        %747 = vmatprep.subr.bf16.mxu0 0
        %748 = vmatpush2.bf16.msra.mxu0 0
        %749 = vmatprep.subr.bf16.mxu0 0
        %750 = vmatpush2.bf16.msra.mxu0 0
        %751 = vmatprep.mubr.bf16.mxu0 0
        %752 = vmatmul.mubr.bf16.gmra.mxu0 %v714
        %v753 = vpop.f32.mrf.mxu0
        %v754 = vadd.f32 0.0, %v753
        %v755 = vpop.f32.mrf.mxu0
        %v756 = vpop.f32.mrf.mxu0
        %v757 = vadd.f32 0.0, %v756
        %v758 = vpop.f32.mrf.mxu0
        %759 = vmatprep.mubr.bf16.mxu0 0
        %760 = vmatmul.mubr.bf16.gmra.mxu0 %v717
        %v761 = vpop.f32.mrf.mxu0
        %v762 = vadd.f32 0.0, %v761
        %v763 = vpop.f32.mrf.mxu0
        %v764 = vpop.f32.mrf.mxu0
        %v765 = vadd.f32 0.0, %v764
        %v766 = vpop.f32.mrf.mxu0
        %767 = vdwg.mxu0
        %v768 = vpack.c.bf16 %v757, %v754
        %v769 = vpack.c.bf16 %v765, %v762
        %v772 = vunpack.c.l.b16 %v768
        %v773 = vunpack.c.h.b16 %v768
        %v774 = vunpack.c.l.b16 %v769
        %v775 = vunpack.c.h.b16 %v769
        %v776 = vpack.c.b16 %v772, %v772
        %v777 = vpack.c.b16 %v773, %v773
        %v778 = vpack.c.b16 %v774, %v774
        %v779 = vpack.c.b16 %v775, %v775
        %784 = vst.msk [vmem:[%s388] sm:$0xf] %vm549, %v776
        %785 = vst.msk [vmem:[%s388 + $0x4] sm:$0xf] %vm549, %v777
        %786 = vst.msk [vmem:[%s388 + $0x8] sm:$0xf] %vm549, %v778
        %787 = vst.msk [vmem:[%s388 + $0xc] sm:$0xf] %vm549, %v779
        %s788 = scalar_lea.vmem %s3, 32
        %v789 = vld [vmem:[%s788] sm:$0xf]
        %v790 = vld [vmem:[%s788 + $0x4] sm:$0xf]
        %v791 = vld [vmem:[%s788 + $0x8] sm:$0xf]
        %v792 = vld [vmem:[%s788 + $0xc] sm:$0xf]
        %v793 = vld [vmem:[%s788 + $0x10] sm:$0xf]
        %v794 = vld [vmem:[%s788 + $0x14] sm:$0xf]
        %v795 = vld [vmem:[%s788 + $0x18] sm:$0xf]
        %v796 = vld [vmem:[%s788 + $0x1c] sm:$0xf]
        %v805 = vunpack.c.l.b16 %v789
        %v806 = vunpack.c.l.b16 %v790
        %v807 = vunpack.c.l.b16 %v791
        %v808 = vunpack.c.l.b16 %v792
        %v809 = vunpack.c.l.b16 %v793
        %v810 = vunpack.c.l.b16 %v794
        %v811 = vunpack.c.l.b16 %v795
        %v812 = vunpack.c.l.b16 %v796
        %v813 = vpack.c.b16 %v806, %v805
        %v814 = vpack.c.b16 %v808, %v807
        %v815 = vpack.c.b16 %v810, %v809
        %v816 = vpack.c.b16 %v812, %v811
        %821 = vmatprep.subr.bf16.mxu0 0
        %822 = vmatpush1.bf16.msra.mxu0 0
        %823 = vmatprep.subr.bf16.mxu0 0
        %824 = vmatpush1.bf16.msra.mxu0 0
        %825 = vmatprep.subr.bf16.mxu0 0
        %826 = vmatpush1.bf16.msra.mxu0 0
        %827 = vmatprep.subr.bf16.mxu0 0
        %828 = vmatpush1.bf16.msra.mxu0 0
        %829 = vmatprep.subr.bf16.mxu0 0
        %830 = vmatpush1.bf16.msra.mxu0 %v816
        %831 = vmatprep.subr.bf16.mxu0 0
        %832 = vmatpush1.bf16.msra.mxu0 %v815
        %833 = vmatprep.subr.bf16.mxu0 0
        %834 = vmatpush1.bf16.msra.mxu0 %v814
        %835 = vmatprep.subr.bf16.mxu0 0
        %836 = vmatpush1.bf16.msra.mxu0 %v813
        %837 = vmatprep.subr.bf16.mxu0 0
        %838 = vmatpush2.bf16.msra.mxu0 0
        %839 = vmatprep.subr.bf16.mxu0 0
        %840 = vmatpush2.bf16.msra.mxu0 0
        %841 = vmatprep.subr.bf16.mxu0 0
        %842 = vmatpush2.bf16.msra.mxu0 0
        %843 = vmatprep.subr.bf16.mxu0 0
        %844 = vmatpush2.bf16.msra.mxu0 0
        %845 = vmatprep.subr.bf16.mxu0 0
        %846 = vmatpush2.bf16.msra.mxu0 0
        %847 = vmatprep.subr.bf16.mxu0 0
        %848 = vmatpush2.bf16.msra.mxu0 0
        %849 = vmatprep.subr.bf16.mxu0 0
        %850 = vmatpush2.bf16.msra.mxu0 0
        %851 = vmatprep.subr.bf16.mxu0 0
        %852 = vmatpush2.bf16.msra.mxu0 0
        %853 = vmatprep.mubr.bf16.mxu0 0
        %854 = vmatmul.mubr.bf16.gmra.mxu0 %v479
        %v855 = vpop.f32.mrf.mxu0
        %v856 = vadd.f32 0.0, %v855
        %v857 = vpop.f32.mrf.mxu0
        %v858 = vpop.f32.mrf.mxu0
        %v859 = vadd.f32 0.0, %v858
        %v860 = vpop.f32.mrf.mxu0
        %861 = vmatprep.mubr.bf16.mxu0 0
        %862 = vmatmul.mubr.bf16.gmra.mxu0 %v482
        %v863 = vpop.f32.mrf.mxu0
        %v864 = vadd.f32 0.0, %v863
        %v865 = vpop.f32.mrf.mxu0
        %v866 = vpop.f32.mrf.mxu0
        %v867 = vadd.f32 0.0, %v866
        %v868 = vpop.f32.mrf.mxu0
        %869 = vdwg.mxu0
        %v870 = vpack.c.bf16 %v859, %v856
        %v871 = vpack.c.bf16 %v867, %v864
        %v874 = vunpack.c.l.b16 %v870
        %v875 = vunpack.c.h.b16 %v870
        %v876 = vunpack.c.l.b16 %v871
        %v877 = vunpack.c.h.b16 %v871
        %v878 = vpack.c.b16 %v874, %v874
        %v879 = vpack.c.b16 %v875, %v875
        %v880 = vpack.c.b16 %v876, %v876
        %v881 = vpack.c.b16 %v877, %v877
        %s886 = scalar_lea.vmem %s376, 16 [#allocation2]
        %887 = vst.msk [vmem:[%s886] sm:$0xf] %vm549, %v878
        %888 = vst.msk [vmem:[%s886 + $0x4] sm:$0xf] %vm549, %v879
        %889 = vst.msk [vmem:[%s886 + $0x8] sm:$0xf] %vm549, %v880
        %890 = vst.msk [vmem:[%s886 + $0xc] sm:$0xf] %vm549, %v881
        %s891 = scalar_lea.vmem %s4, 32
        %v892 = vld [vmem:[%s891] sm:$0xf]
        %v893 = vld [vmem:[%s891 + $0x4] sm:$0xf]
        %v894 = vld [vmem:[%s891 + $0x8] sm:$0xf]
        %v895 = vld [vmem:[%s891 + $0xc] sm:$0xf]
        %v896 = vld [vmem:[%s891 + $0x10] sm:$0xf]
        %v897 = vld [vmem:[%s891 + $0x14] sm:$0xf]
        %v898 = vld [vmem:[%s891 + $0x18] sm:$0xf]
        %v899 = vld [vmem:[%s891 + $0x1c] sm:$0xf]
        %v908 = vunpack.c.l.b16 %v892
        %v909 = vunpack.c.l.b16 %v893
        %v910 = vunpack.c.l.b16 %v894
        %v911 = vunpack.c.l.b16 %v895
        %v912 = vunpack.c.l.b16 %v896
        %v913 = vunpack.c.l.b16 %v897
        %v914 = vunpack.c.l.b16 %v898
        %v915 = vunpack.c.l.b16 %v899
        %v916 = vpack.c.b16 %v909, %v908
        %v917 = vpack.c.b16 %v911, %v910
        %v918 = vpack.c.b16 %v913, %v912
        %v919 = vpack.c.b16 %v915, %v914
        %924 = vmatprep.subr.bf16.mxu0 0
        %925 = vmatpush1.bf16.msra.mxu0 0
        %926 = vmatprep.subr.bf16.mxu0 0
        %927 = vmatpush1.bf16.msra.mxu0 0
        %928 = vmatprep.subr.bf16.mxu0 0
        %929 = vmatpush1.bf16.msra.mxu0 0
        %930 = vmatprep.subr.bf16.mxu0 0
        %931 = vmatpush1.bf16.msra.mxu0 0
        %932 = vmatprep.subr.bf16.mxu0 0
        %933 = vmatpush1.bf16.msra.mxu0 %v919
        %934 = vmatprep.subr.bf16.mxu0 0
        %935 = vmatpush1.bf16.msra.mxu0 %v918
        %936 = vmatprep.subr.bf16.mxu0 0
        %937 = vmatpush1.bf16.msra.mxu0 %v917
        %938 = vmatprep.subr.bf16.mxu0 0
        %939 = vmatpush1.bf16.msra.mxu0 %v916
        %940 = vmatprep.subr.bf16.mxu0 0
        %941 = vmatpush2.bf16.msra.mxu0 0
        %942 = vmatprep.subr.bf16.mxu0 0
        %943 = vmatpush2.bf16.msra.mxu0 0
        %944 = vmatprep.subr.bf16.mxu0 0
        %945 = vmatpush2.bf16.msra.mxu0 0
        %946 = vmatprep.subr.bf16.mxu0 0
        %947 = vmatpush2.bf16.msra.mxu0 0
        %948 = vmatprep.subr.bf16.mxu0 0
        %949 = vmatpush2.bf16.msra.mxu0 0
        %950 = vmatprep.subr.bf16.mxu0 0
        %951 = vmatpush2.bf16.msra.mxu0 0
        %952 = vmatprep.subr.bf16.mxu0 0
        %953 = vmatpush2.bf16.msra.mxu0 0
        %954 = vmatprep.subr.bf16.mxu0 0
        %955 = vmatpush2.bf16.msra.mxu0 0
        %956 = vmatprep.mubr.bf16.mxu0 0
        %957 = vmatmul.mubr.bf16.gmra.mxu0 %v597
        %v958 = vpop.f32.mrf.mxu0
        %v959 = vadd.f32 0.0, %v958
        %v960 = vpop.f32.mrf.mxu0
        %v961 = vpop.f32.mrf.mxu0
        %v962 = vadd.f32 0.0, %v961
        %v963 = vpop.f32.mrf.mxu0
        %964 = vmatprep.mubr.bf16.mxu0 0
        %965 = vmatmul.mubr.bf16.gmra.mxu0 %v600
        %v966 = vpop.f32.mrf.mxu0
        %v967 = vadd.f32 0.0, %v966
        %v968 = vpop.f32.mrf.mxu0
        %v969 = vpop.f32.mrf.mxu0
        %v970 = vadd.f32 0.0, %v969
        %v971 = vpop.f32.mrf.mxu0
        %972 = vdwg.mxu0
        %v973 = vpack.c.bf16 %v962, %v959
        %v974 = vpack.c.bf16 %v970, %v967
        %v977 = vunpack.c.l.b16 %v973
        %v978 = vunpack.c.h.b16 %v973
        %v979 = vunpack.c.l.b16 %v974
        %v980 = vunpack.c.h.b16 %v974
        %v981 = vpack.c.b16 %v977, %v977
        %v982 = vpack.c.b16 %v978, %v978
        %v983 = vpack.c.b16 %v979, %v979
        %v984 = vpack.c.b16 %v980, %v980
        %s989 = scalar_lea.vmem %s382, 16 [#allocation3]
        %990 = vst.msk [vmem:[%s989] sm:$0xf] %vm549, %v981
        %991 = vst.msk [vmem:[%s989 + $0x4] sm:$0xf] %vm549, %v982
        %992 = vst.msk [vmem:[%s989 + $0x8] sm:$0xf] %vm549, %v983
        %993 = vst.msk [vmem:[%s989 + $0xc] sm:$0xf] %vm549, %v984
        %s994 = scalar_lea.vmem %s5, 32
        %v995 = vld [vmem:[%s994] sm:$0xf]
        %v996 = vld [vmem:[%s994 + $0x4] sm:$0xf]
        %v997 = vld [vmem:[%s994 + $0x8] sm:$0xf]
        %v998 = vld [vmem:[%s994 + $0xc] sm:$0xf]
        %v999 = vld [vmem:[%s994 + $0x10] sm:$0xf]
        %v1000 = vld [vmem:[%s994 + $0x14] sm:$0xf]
        %v1001 = vld [vmem:[%s994 + $0x18] sm:$0xf]
        %v1002 = vld [vmem:[%s994 + $0x1c] sm:$0xf]
        %v1011 = vunpack.c.l.b16 %v995
        %v1012 = vunpack.c.l.b16 %v996
        %v1013 = vunpack.c.l.b16 %v997
        %v1014 = vunpack.c.l.b16 %v998
        %v1015 = vunpack.c.l.b16 %v999
        %v1016 = vunpack.c.l.b16 %v1000
        %v1017 = vunpack.c.l.b16 %v1001
        %v1018 = vunpack.c.l.b16 %v1002
        %v1019 = vpack.c.b16 %v1012, %v1011
        %v1020 = vpack.c.b16 %v1014, %v1013
        %v1021 = vpack.c.b16 %v1016, %v1015
        %v1022 = vpack.c.b16 %v1018, %v1017
        %1027 = vmatprep.subr.bf16.mxu0 0
        %1028 = vmatpush1.bf16.msra.mxu0 0
        %1029 = vmatprep.subr.bf16.mxu0 0
        %1030 = vmatpush1.bf16.msra.mxu0 0
        %1031 = vmatprep.subr.bf16.mxu0 0
        %1032 = vmatpush1.bf16.msra.mxu0 0
        %1033 = vmatprep.subr.bf16.mxu0 0
        %1034 = vmatpush1.bf16.msra.mxu0 0
        %1035 = vmatprep.subr.bf16.mxu0 0
        %1036 = vmatpush1.bf16.msra.mxu0 %v1022
        %1037 = vmatprep.subr.bf16.mxu0 0
        %1038 = vmatpush1.bf16.msra.mxu0 %v1021
        %1039 = vmatprep.subr.bf16.mxu0 0
        %1040 = vmatpush1.bf16.msra.mxu0 %v1020
        %1041 = vmatprep.subr.bf16.mxu0 0
        %1042 = vmatpush1.bf16.msra.mxu0 %v1019
        %1043 = vmatprep.subr.bf16.mxu0 0
        %1044 = vmatpush2.bf16.msra.mxu0 0
        %1045 = vmatprep.subr.bf16.mxu0 0
        %1046 = vmatpush2.bf16.msra.mxu0 0
        %1047 = vmatprep.subr.bf16.mxu0 0
        %1048 = vmatpush2.bf16.msra.mxu0 0
        %1049 = vmatprep.subr.bf16.mxu0 0
        %1050 = vmatpush2.bf16.msra.mxu0 0
        %1051 = vmatprep.subr.bf16.mxu0 0
        %1052 = vmatpush2.bf16.msra.mxu0 0
        %1053 = vmatprep.subr.bf16.mxu0 0
        %1054 = vmatpush2.bf16.msra.mxu0 0
        %1055 = vmatprep.subr.bf16.mxu0 0
        %1056 = vmatpush2.bf16.msra.mxu0 0
        %1057 = vmatprep.subr.bf16.mxu0 0
        %1058 = vmatpush2.bf16.msra.mxu0 0
        %1059 = vmatprep.mubr.bf16.mxu0 0
        %1060 = vmatmul.mubr.bf16.gmra.mxu0 %v714
        %v1061 = vpop.f32.mrf.mxu0
        %v1062 = vadd.f32 0.0, %v1061
        %v1063 = vpop.f32.mrf.mxu0
        %v1064 = vpop.f32.mrf.mxu0
        %v1065 = vadd.f32 0.0, %v1064
        %v1066 = vpop.f32.mrf.mxu0
        %1067 = vmatprep.mubr.bf16.mxu0 0
        %1068 = vmatmul.mubr.bf16.gmra.mxu0 %v717
        %v1069 = vpop.f32.mrf.mxu0
        %v1070 = vadd.f32 0.0, %v1069
        %v1071 = vpop.f32.mrf.mxu0
        %v1072 = vpop.f32.mrf.mxu0
        %v1073 = vadd.f32 0.0, %v1072
        %v1074 = vpop.f32.mrf.mxu0
        %1075 = vdwg.mxu0
        %v1076 = vpack.c.bf16 %v1065, %v1062
        %v1077 = vpack.c.bf16 %v1073, %v1070
        %v1080 = vunpack.c.l.b16 %v1076
        %v1081 = vunpack.c.h.b16 %v1076
        %v1082 = vunpack.c.l.b16 %v1077
        %v1083 = vunpack.c.h.b16 %v1077
        %v1084 = vpack.c.b16 %v1080, %v1080
        %v1085 = vpack.c.b16 %v1081, %v1081
        %v1086 = vpack.c.b16 %v1082, %v1082
        %v1087 = vpack.c.b16 %v1083, %v1083
        %s1092 = scalar_lea.vmem %s388, 16 [#allocation4]
        %1093 = vst.msk [vmem:[%s1092] sm:$0xf] %vm549, %v1084
        %1094 = vst.msk [vmem:[%s1092 + $0x4] sm:$0xf] %vm549, %v1085
        %1095 = vst.msk [vmem:[%s1092 + $0x8] sm:$0xf] %vm549, %v1086
        %1096 = vst.msk [vmem:[%s1092 + $0xc] sm:$0xf] %vm549, %v1087
        %s1097 = scalar_lea.vmem %s3, 64
        %v1098 = vld [vmem:[%s1097] sm:$0xf]
        %v1099 = vld [vmem:[%s1097 + $0x4] sm:$0xf]
        %v1100 = vld [vmem:[%s1097 + $0x8] sm:$0xf]
        %v1101 = vld [vmem:[%s1097 + $0xc] sm:$0xf]
        %v1102 = vld [vmem:[%s1097 + $0x10] sm:$0xf]
        %v1103 = vld [vmem:[%s1097 + $0x14] sm:$0xf]
        %v1104 = vld [vmem:[%s1097 + $0x18] sm:$0xf]
        %v1105 = vld [vmem:[%s1097 + $0x1c] sm:$0xf]
        %v1114 = vunpack.c.l.b16 %v1098
        %v1115 = vunpack.c.l.b16 %v1099
        %v1116 = vunpack.c.l.b16 %v1100
        %v1117 = vunpack.c.l.b16 %v1101
        %v1118 = vunpack.c.l.b16 %v1102
        %v1119 = vunpack.c.l.b16 %v1103
        %v1120 = vunpack.c.l.b16 %v1104
        %v1121 = vunpack.c.l.b16 %v1105
        %v1122 = vpack.c.b16 %v1115, %v1114
        %v1123 = vpack.c.b16 %v1117, %v1116
        %v1124 = vpack.c.b16 %v1119, %v1118
        %v1125 = vpack.c.b16 %v1121, %v1120
        %1130 = vmatprep.subr.bf16.mxu0 0
        %1131 = vmatpush1.bf16.msra.mxu0 0
        %1132 = vmatprep.subr.bf16.mxu0 0
        %1133 = vmatpush1.bf16.msra.mxu0 0
        %1134 = vmatprep.subr.bf16.mxu0 0
        %1135 = vmatpush1.bf16.msra.mxu0 0
        %1136 = vmatprep.subr.bf16.mxu0 0
        %1137 = vmatpush1.bf16.msra.mxu0 0
        %1138 = vmatprep.subr.bf16.mxu0 0
        %1139 = vmatpush1.bf16.msra.mxu0 %v1125
        %1140 = vmatprep.subr.bf16.mxu0 0
        %1141 = vmatpush1.bf16.msra.mxu0 %v1124
        %1142 = vmatprep.subr.bf16.mxu0 0
        %1143 = vmatpush1.bf16.msra.mxu0 %v1123
        %1144 = vmatprep.subr.bf16.mxu0 0
        %1145 = vmatpush1.bf16.msra.mxu0 %v1122
        %1146 = vmatprep.subr.bf16.mxu0 0
        %1147 = vmatpush2.bf16.msra.mxu0 0
        %1148 = vmatprep.subr.bf16.mxu0 0
        %1149 = vmatpush2.bf16.msra.mxu0 0
        %1150 = vmatprep.subr.bf16.mxu0 0
        %1151 = vmatpush2.bf16.msra.mxu0 0
        %1152 = vmatprep.subr.bf16.mxu0 0
        %1153 = vmatpush2.bf16.msra.mxu0 0
        %1154 = vmatprep.subr.bf16.mxu0 0
        %1155 = vmatpush2.bf16.msra.mxu0 0
        %1156 = vmatprep.subr.bf16.mxu0 0
        %1157 = vmatpush2.bf16.msra.mxu0 0
        %1158 = vmatprep.subr.bf16.mxu0 0
        %1159 = vmatpush2.bf16.msra.mxu0 0
        %1160 = vmatprep.subr.bf16.mxu0 0
        %1161 = vmatpush2.bf16.msra.mxu0 0
        %1162 = vmatprep.mubr.bf16.mxu0 0
        %1163 = vmatmul.mubr.bf16.gmra.mxu0 %v479
        %v1164 = vpop.f32.mrf.mxu0
        %v1165 = vadd.f32 0.0, %v1164
        %v1166 = vpop.f32.mrf.mxu0
        %v1167 = vpop.f32.mrf.mxu0
        %v1168 = vadd.f32 0.0, %v1167
        %v1169 = vpop.f32.mrf.mxu0
        %1170 = vmatprep.mubr.bf16.mxu0 0
        %1171 = vmatmul.mubr.bf16.gmra.mxu0 %v482
        %v1172 = vpop.f32.mrf.mxu0
        %v1173 = vadd.f32 0.0, %v1172
        %v1174 = vpop.f32.mrf.mxu0
        %v1175 = vpop.f32.mrf.mxu0
        %v1176 = vadd.f32 0.0, %v1175
        %v1177 = vpop.f32.mrf.mxu0
        %1178 = vdwg.mxu0
        %v1179 = vpack.c.bf16 %v1168, %v1165
        %v1180 = vpack.c.bf16 %v1176, %v1173
        %v1183 = vunpack.c.l.b16 %v1179
        %v1184 = vunpack.c.h.b16 %v1179
        %v1185 = vunpack.c.l.b16 %v1180
        %v1186 = vunpack.c.h.b16 %v1180
        %v1187 = vpack.c.b16 %v1183, %v1183
        %v1188 = vpack.c.b16 %v1184, %v1184
        %v1189 = vpack.c.b16 %v1185, %v1185
        %v1190 = vpack.c.b16 %v1186, %v1186
        %s1195 = scalar_lea.vmem %s376, 32 [#allocation2]
        %1196 = vst.msk [vmem:[%s1195] sm:$0xf] %vm549, %v1187
        %1197 = vst.msk [vmem:[%s1195 + $0x4] sm:$0xf] %vm549, %v1188
        %1198 = vst.msk [vmem:[%s1195 + $0x8] sm:$0xf] %vm549, %v1189
        %1199 = vst.msk [vmem:[%s1195 + $0xc] sm:$0xf] %vm549, %v1190
        %s1200 = scalar_lea.vmem %s4, 64
        %v1201 = vld [vmem:[%s1200] sm:$0xf]
        %v1202 = vld [vmem:[%s1200 + $0x4] sm:$0xf]
        %v1203 = vld [vmem:[%s1200 + $0x8] sm:$0xf]
        %v1204 = vld [vmem:[%s1200 + $0xc] sm:$0xf]
        %v1205 = vld [vmem:[%s1200 + $0x10] sm:$0xf]
        %v1206 = vld [vmem:[%s1200 + $0x14] sm:$0xf]
        %v1207 = vld [vmem:[%s1200 + $0x18] sm:$0xf]
        %v1208 = vld [vmem:[%s1200 + $0x1c] sm:$0xf]
        %v1217 = vunpack.c.l.b16 %v1201
        %v1218 = vunpack.c.l.b16 %v1202
        %v1219 = vunpack.c.l.b16 %v1203
        %v1220 = vunpack.c.l.b16 %v1204
        %v1221 = vunpack.c.l.b16 %v1205
        %v1222 = vunpack.c.l.b16 %v1206
        %v1223 = vunpack.c.l.b16 %v1207
        %v1224 = vunpack.c.l.b16 %v1208
        %v1225 = vpack.c.b16 %v1218, %v1217
        %v1226 = vpack.c.b16 %v1220, %v1219
        %v1227 = vpack.c.b16 %v1222, %v1221
        %v1228 = vpack.c.b16 %v1224, %v1223
        %1233 = vmatprep.subr.bf16.mxu0 0
        %1234 = vmatpush1.bf16.msra.mxu0 0
        %1235 = vmatprep.subr.bf16.mxu0 0
        %1236 = vmatpush1.bf16.msra.mxu0 0
        %1237 = vmatprep.subr.bf16.mxu0 0
        %1238 = vmatpush1.bf16.msra.mxu0 0
        %1239 = vmatprep.subr.bf16.mxu0 0
        %1240 = vmatpush1.bf16.msra.mxu0 0
        %1241 = vmatprep.subr.bf16.mxu0 0
        %1242 = vmatpush1.bf16.msra.mxu0 %v1228
        %1243 = vmatprep.subr.bf16.mxu0 0
        %1244 = vmatpush1.bf16.msra.mxu0 %v1227
        %1245 = vmatprep.subr.bf16.mxu0 0
        %1246 = vmatpush1.bf16.msra.mxu0 %v1226
        %1247 = vmatprep.subr.bf16.mxu0 0
        %1248 = vmatpush1.bf16.msra.mxu0 %v1225
        %1249 = vmatprep.subr.bf16.mxu0 0
        %1250 = vmatpush2.bf16.msra.mxu0 0
        %1251 = vmatprep.subr.bf16.mxu0 0
        %1252 = vmatpush2.bf16.msra.mxu0 0
        %1253 = vmatprep.subr.bf16.mxu0 0
        %1254 = vmatpush2.bf16.msra.mxu0 0
        %1255 = vmatprep.subr.bf16.mxu0 0
        %1256 = vmatpush2.bf16.msra.mxu0 0
        %1257 = vmatprep.subr.bf16.mxu0 0
        %1258 = vmatpush2.bf16.msra.mxu0 0
        %1259 = vmatprep.subr.bf16.mxu0 0
        %1260 = vmatpush2.bf16.msra.mxu0 0
        %1261 = vmatprep.subr.bf16.mxu0 0
        %1262 = vmatpush2.bf16.msra.mxu0 0
        %1263 = vmatprep.subr.bf16.mxu0 0
        %1264 = vmatpush2.bf16.msra.mxu0 0
        %1265 = vmatprep.mubr.bf16.mxu0 0
        %1266 = vmatmul.mubr.bf16.gmra.mxu0 %v597
        %v1267 = vpop.f32.mrf.mxu0
        %v1268 = vadd.f32 0.0, %v1267
        %v1269 = vpop.f32.mrf.mxu0
        %v1270 = vpop.f32.mrf.mxu0
        %v1271 = vadd.f32 0.0, %v1270
        %v1272 = vpop.f32.mrf.mxu0
        %1273 = vmatprep.mubr.bf16.mxu0 0
        %1274 = vmatmul.mubr.bf16.gmra.mxu0 %v600
        %v1275 = vpop.f32.mrf.mxu0
        %v1276 = vadd.f32 0.0, %v1275
        %v1277 = vpop.f32.mrf.mxu0
        %v1278 = vpop.f32.mrf.mxu0
        %v1279 = vadd.f32 0.0, %v1278
        %v1280 = vpop.f32.mrf.mxu0
        %1281 = vdwg.mxu0
        %v1282 = vpack.c.bf16 %v1271, %v1268
        %v1283 = vpack.c.bf16 %v1279, %v1276
        %v1286 = vunpack.c.l.b16 %v1282
        %v1287 = vunpack.c.h.b16 %v1282
        %v1288 = vunpack.c.l.b16 %v1283
        %v1289 = vunpack.c.h.b16 %v1283
        %v1290 = vpack.c.b16 %v1286, %v1286
        %v1291 = vpack.c.b16 %v1287, %v1287
        %v1292 = vpack.c.b16 %v1288, %v1288
        %v1293 = vpack.c.b16 %v1289, %v1289
        %s1298 = scalar_lea.vmem %s382, 32 [#allocation3]
        %1299 = vst.msk [vmem:[%s1298] sm:$0xf] %vm549, %v1290
        %1300 = vst.msk [vmem:[%s1298 + $0x4] sm:$0xf] %vm549, %v1291
        %1301 = vst.msk [vmem:[%s1298 + $0x8] sm:$0xf] %vm549, %v1292
        %1302 = vst.msk [vmem:[%s1298 + $0xc] sm:$0xf] %vm549, %v1293
        %s1303 = scalar_lea.vmem %s5, 64
        %v1304 = vld [vmem:[%s1303] sm:$0xf]
        %v1305 = vld [vmem:[%s1303 + $0x4] sm:$0xf]
        %v1306 = vld [vmem:[%s1303 + $0x8] sm:$0xf]
        %v1307 = vld [vmem:[%s1303 + $0xc] sm:$0xf]
        %v1308 = vld [vmem:[%s1303 + $0x10] sm:$0xf]
        %v1309 = vld [vmem:[%s1303 + $0x14] sm:$0xf]
        %v1310 = vld [vmem:[%s1303 + $0x18] sm:$0xf]
        %v1311 = vld [vmem:[%s1303 + $0x1c] sm:$0xf]
        %v1320 = vunpack.c.l.b16 %v1304
        %v1321 = vunpack.c.l.b16 %v1305
        %v1322 = vunpack.c.l.b16 %v1306
        %v1323 = vunpack.c.l.b16 %v1307
        %v1324 = vunpack.c.l.b16 %v1308
        %v1325 = vunpack.c.l.b16 %v1309
        %v1326 = vunpack.c.l.b16 %v1310
        %v1327 = vunpack.c.l.b16 %v1311
        %v1328 = vpack.c.b16 %v1321, %v1320
        %v1329 = vpack.c.b16 %v1323, %v1322
        %v1330 = vpack.c.b16 %v1325, %v1324
        %v1331 = vpack.c.b16 %v1327, %v1326
        %1336 = vmatprep.subr.bf16.mxu0 0
        %1337 = vmatpush1.bf16.msra.mxu0 0
        %1338 = vmatprep.subr.bf16.mxu0 0
        %1339 = vmatpush1.bf16.msra.mxu0 0
        %1340 = vmatprep.subr.bf16.mxu0 0
        %1341 = vmatpush1.bf16.msra.mxu0 0
        %1342 = vmatprep.subr.bf16.mxu0 0
        %1343 = vmatpush1.bf16.msra.mxu0 0
        %1344 = vmatprep.subr.bf16.mxu0 0
        %1345 = vmatpush1.bf16.msra.mxu0 %v1331
        %1346 = vmatprep.subr.bf16.mxu0 0
        %1347 = vmatpush1.bf16.msra.mxu0 %v1330
        %1348 = vmatprep.subr.bf16.mxu0 0
        %1349 = vmatpush1.bf16.msra.mxu0 %v1329
        %1350 = vmatprep.subr.bf16.mxu0 0
        %1351 = vmatpush1.bf16.msra.mxu0 %v1328
        %1352 = vmatprep.subr.bf16.mxu0 0
        %1353 = vmatpush2.bf16.msra.mxu0 0
        %1354 = vmatprep.subr.bf16.mxu0 0
        %1355 = vmatpush2.bf16.msra.mxu0 0
        %1356 = vmatprep.subr.bf16.mxu0 0
        %1357 = vmatpush2.bf16.msra.mxu0 0
        %1358 = vmatprep.subr.bf16.mxu0 0
        %1359 = vmatpush2.bf16.msra.mxu0 0
        %1360 = vmatprep.subr.bf16.mxu0 0
        %1361 = vmatpush2.bf16.msra.mxu0 0
        %1362 = vmatprep.subr.bf16.mxu0 0
        %1363 = vmatpush2.bf16.msra.mxu0 0
        %1364 = vmatprep.subr.bf16.mxu0 0
        %1365 = vmatpush2.bf16.msra.mxu0 0
        %1366 = vmatprep.subr.bf16.mxu0 0
        %1367 = vmatpush2.bf16.msra.mxu0 0
        %1368 = vmatprep.mubr.bf16.mxu0 0
        %1369 = vmatmul.mubr.bf16.gmra.mxu0 %v714
        %v1370 = vpop.f32.mrf.mxu0
        %v1371 = vadd.f32 0.0, %v1370
        %v1372 = vpop.f32.mrf.mxu0
        %v1373 = vpop.f32.mrf.mxu0
        %v1374 = vadd.f32 0.0, %v1373
        %v1375 = vpop.f32.mrf.mxu0
        %1376 = vmatprep.mubr.bf16.mxu0 0
        %1377 = vmatmul.mubr.bf16.gmra.mxu0 %v717
        %v1378 = vpop.f32.mrf.mxu0
        %v1379 = vadd.f32 0.0, %v1378
        %v1380 = vpop.f32.mrf.mxu0
        %v1381 = vpop.f32.mrf.mxu0
        %v1382 = vadd.f32 0.0, %v1381
        %v1383 = vpop.f32.mrf.mxu0
        %1384 = vdwg.mxu0
        %v1385 = vpack.c.bf16 %v1374, %v1371
        %v1386 = vpack.c.bf16 %v1382, %v1379
        %v1389 = vunpack.c.l.b16 %v1385
        %v1390 = vunpack.c.h.b16 %v1385
        %v1391 = vunpack.c.l.b16 %v1386
        %v1392 = vunpack.c.h.b16 %v1386
        %v1393 = vpack.c.b16 %v1389, %v1389
        %v1394 = vpack.c.b16 %v1390, %v1390
        %v1395 = vpack.c.b16 %v1391, %v1391
        %v1396 = vpack.c.b16 %v1392, %v1392
        %s1401 = scalar_lea.vmem %s388, 32 [#allocation4]
        %1402 = vst.msk [vmem:[%s1401] sm:$0xf] %vm549, %v1393
        %1403 = vst.msk [vmem:[%s1401 + $0x4] sm:$0xf] %vm549, %v1394
        %1404 = vst.msk [vmem:[%s1401 + $0x8] sm:$0xf] %vm549, %v1395
        %1405 = vst.msk [vmem:[%s1401 + $0xc] sm:$0xf] %vm549, %v1396
        %s1406 = scalar_lea.vmem %s3, 96
        %v1407 = vld [vmem:[%s1406] sm:$0xf]
        %v1408 = vld [vmem:[%s1406 + $0x4] sm:$0xf]
        %v1409 = vld [vmem:[%s1406 + $0x8] sm:$0xf]
        %v1410 = vld [vmem:[%s1406 + $0xc] sm:$0xf]
        %v1411 = vld [vmem:[%s1406 + $0x10] sm:$0xf]
        %v1412 = vld [vmem:[%s1406 + $0x14] sm:$0xf]
        %v1413 = vld [vmem:[%s1406 + $0x18] sm:$0xf]
        %v1414 = vld [vmem:[%s1406 + $0x1c] sm:$0xf]
        %v1423 = vunpack.c.l.b16 %v1407
        %v1424 = vunpack.c.l.b16 %v1408
        %v1425 = vunpack.c.l.b16 %v1409
        %v1426 = vunpack.c.l.b16 %v1410
        %v1427 = vunpack.c.l.b16 %v1411
        %v1428 = vunpack.c.l.b16 %v1412
        %v1429 = vunpack.c.l.b16 %v1413
        %v1430 = vunpack.c.l.b16 %v1414
        %v1431 = vpack.c.b16 %v1424, %v1423
        %v1432 = vpack.c.b16 %v1426, %v1425
        %v1433 = vpack.c.b16 %v1428, %v1427
        %v1434 = vpack.c.b16 %v1430, %v1429
        %1439 = vmatprep.subr.bf16.mxu0 0
        %1440 = vmatpush1.bf16.msra.mxu0 0
        %1441 = vmatprep.subr.bf16.mxu0 0
        %1442 = vmatpush1.bf16.msra.mxu0 0
        %1443 = vmatprep.subr.bf16.mxu0 0
        %1444 = vmatpush1.bf16.msra.mxu0 0
        %1445 = vmatprep.subr.bf16.mxu0 0
        %1446 = vmatpush1.bf16.msra.mxu0 0
        %1447 = vmatprep.subr.bf16.mxu0 0
        %1448 = vmatpush1.bf16.msra.mxu0 %v1434
        %1449 = vmatprep.subr.bf16.mxu0 0
        %1450 = vmatpush1.bf16.msra.mxu0 %v1433
        %1451 = vmatprep.subr.bf16.mxu0 0
        %1452 = vmatpush1.bf16.msra.mxu0 %v1432
        %1453 = vmatprep.subr.bf16.mxu0 0
        %1454 = vmatpush1.bf16.msra.mxu0 %v1431
        %1455 = vmatprep.subr.bf16.mxu0 0
        %1456 = vmatpush2.bf16.msra.mxu0 0
        %1457 = vmatprep.subr.bf16.mxu0 0
        %1458 = vmatpush2.bf16.msra.mxu0 0
        %1459 = vmatprep.subr.bf16.mxu0 0
        %1460 = vmatpush2.bf16.msra.mxu0 0
        %1461 = vmatprep.subr.bf16.mxu0 0
        %1462 = vmatpush2.bf16.msra.mxu0 0
        %1463 = vmatprep.subr.bf16.mxu0 0
        %1464 = vmatpush2.bf16.msra.mxu0 0
        %1465 = vmatprep.subr.bf16.mxu0 0
        %1466 = vmatpush2.bf16.msra.mxu0 0
        %1467 = vmatprep.subr.bf16.mxu0 0
        %1468 = vmatpush2.bf16.msra.mxu0 0
        %1469 = vmatprep.subr.bf16.mxu0 0
        %1470 = vmatpush2.bf16.msra.mxu0 0
        %1471 = vmatprep.mubr.bf16.mxu0 0
        %1472 = vmatmul.mubr.bf16.gmra.mxu0 %v479
        %v1473 = vpop.f32.mrf.mxu0
        %v1474 = vadd.f32 0.0, %v1473
        %v1475 = vpop.f32.mrf.mxu0
        %v1476 = vpop.f32.mrf.mxu0
        %v1477 = vadd.f32 0.0, %v1476
        %v1478 = vpop.f32.mrf.mxu0
        %1479 = vmatprep.mubr.bf16.mxu0 0
        %1480 = vmatmul.mubr.bf16.gmra.mxu0 %v482
        %v1481 = vpop.f32.mrf.mxu0
        %v1482 = vadd.f32 0.0, %v1481
        %v1483 = vpop.f32.mrf.mxu0
        %v1484 = vpop.f32.mrf.mxu0
        %v1485 = vadd.f32 0.0, %v1484
        %v1486 = vpop.f32.mrf.mxu0
        %1487 = vdwg.mxu0
        %v1488 = vpack.c.bf16 %v1477, %v1474
        %v1489 = vpack.c.bf16 %v1485, %v1482
        %v1492 = vunpack.c.l.b16 %v1488
        %v1493 = vunpack.c.h.b16 %v1488
        %v1494 = vunpack.c.l.b16 %v1489
        %v1495 = vunpack.c.h.b16 %v1489
        %v1496 = vpack.c.b16 %v1492, %v1492
        %v1497 = vpack.c.b16 %v1493, %v1493
        %v1498 = vpack.c.b16 %v1494, %v1494
        %v1499 = vpack.c.b16 %v1495, %v1495
        %s1504 = scalar_lea.vmem %s376, 48 [#allocation2]
        %1505 = vst.msk [vmem:[%s1504] sm:$0xf] %vm549, %v1496
        %1506 = vst.msk [vmem:[%s1504 + $0x4] sm:$0xf] %vm549, %v1497
        %1507 = vst.msk [vmem:[%s1504 + $0x8] sm:$0xf] %vm549, %v1498
        %1508 = vst.msk [vmem:[%s1504 + $0xc] sm:$0xf] %vm549, %v1499
        %s1509 = scalar_lea.vmem %s4, 96
        %v1510 = vld [vmem:[%s1509] sm:$0xf]
        %v1511 = vld [vmem:[%s1509 + $0x4] sm:$0xf]
        %v1512 = vld [vmem:[%s1509 + $0x8] sm:$0xf]
        %v1513 = vld [vmem:[%s1509 + $0xc] sm:$0xf]
        %v1514 = vld [vmem:[%s1509 + $0x10] sm:$0xf]
        %v1515 = vld [vmem:[%s1509 + $0x14] sm:$0xf]
        %v1516 = vld [vmem:[%s1509 + $0x18] sm:$0xf]
        %v1517 = vld [vmem:[%s1509 + $0x1c] sm:$0xf]
        %v1526 = vunpack.c.l.b16 %v1510
        %v1527 = vunpack.c.l.b16 %v1511
        %v1528 = vunpack.c.l.b16 %v1512
        %v1529 = vunpack.c.l.b16 %v1513
        %v1530 = vunpack.c.l.b16 %v1514
        %v1531 = vunpack.c.l.b16 %v1515
        %v1532 = vunpack.c.l.b16 %v1516
        %v1533 = vunpack.c.l.b16 %v1517
        %v1534 = vpack.c.b16 %v1527, %v1526
        %v1535 = vpack.c.b16 %v1529, %v1528
        %v1536 = vpack.c.b16 %v1531, %v1530
        %v1537 = vpack.c.b16 %v1533, %v1532
        %1542 = vmatprep.subr.bf16.mxu0 0
        %1543 = vmatpush1.bf16.msra.mxu0 0
        %1544 = vmatprep.subr.bf16.mxu0 0
        %1545 = vmatpush1.bf16.msra.mxu0 0
        %1546 = vmatprep.subr.bf16.mxu0 0
        %1547 = vmatpush1.bf16.msra.mxu0 0
        %1548 = vmatprep.subr.bf16.mxu0 0
        %1549 = vmatpush1.bf16.msra.mxu0 0
        %1550 = vmatprep.subr.bf16.mxu0 0
        %1551 = vmatpush1.bf16.msra.mxu0 %v1537
        %1552 = vmatprep.subr.bf16.mxu0 0
        %1553 = vmatpush1.bf16.msra.mxu0 %v1536
        %1554 = vmatprep.subr.bf16.mxu0 0
        %1555 = vmatpush1.bf16.msra.mxu0 %v1535
        %1556 = vmatprep.subr.bf16.mxu0 0
        %1557 = vmatpush1.bf16.msra.mxu0 %v1534
        %1558 = vmatprep.subr.bf16.mxu0 0
        %1559 = vmatpush2.bf16.msra.mxu0 0
        %1560 = vmatprep.subr.bf16.mxu0 0
        %1561 = vmatpush2.bf16.msra.mxu0 0
        %1562 = vmatprep.subr.bf16.mxu0 0
        %1563 = vmatpush2.bf16.msra.mxu0 0
        %1564 = vmatprep.subr.bf16.mxu0 0
        %1565 = vmatpush2.bf16.msra.mxu0 0
        %1566 = vmatprep.subr.bf16.mxu0 0
        %1567 = vmatpush2.bf16.msra.mxu0 0
        %1568 = vmatprep.subr.bf16.mxu0 0
        %1569 = vmatpush2.bf16.msra.mxu0 0
        %1570 = vmatprep.subr.bf16.mxu0 0
        %1571 = vmatpush2.bf16.msra.mxu0 0
        %1572 = vmatprep.subr.bf16.mxu0 0
        %1573 = vmatpush2.bf16.msra.mxu0 0
        %1574 = vmatprep.mubr.bf16.mxu0 0
        %1575 = vmatmul.mubr.bf16.gmra.mxu0 %v597
        %v1576 = vpop.f32.mrf.mxu0
        %v1577 = vadd.f32 0.0, %v1576
        %v1578 = vpop.f32.mrf.mxu0
        %v1579 = vpop.f32.mrf.mxu0
        %v1580 = vadd.f32 0.0, %v1579
        %v1581 = vpop.f32.mrf.mxu0
        %1582 = vmatprep.mubr.bf16.mxu0 0
        %1583 = vmatmul.mubr.bf16.gmra.mxu0 %v600
        %v1584 = vpop.f32.mrf.mxu0
        %v1585 = vadd.f32 0.0, %v1584
        %v1586 = vpop.f32.mrf.mxu0
        %v1587 = vpop.f32.mrf.mxu0
        %v1588 = vadd.f32 0.0, %v1587
        %v1589 = vpop.f32.mrf.mxu0
        %1590 = vdwg.mxu0
        %v1591 = vpack.c.bf16 %v1580, %v1577
        %v1592 = vpack.c.bf16 %v1588, %v1585
        %v1595 = vunpack.c.l.b16 %v1591
        %v1596 = vunpack.c.h.b16 %v1591
        %v1597 = vunpack.c.l.b16 %v1592
        %v1598 = vunpack.c.h.b16 %v1592
        %v1599 = vpack.c.b16 %v1595, %v1595
        %v1600 = vpack.c.b16 %v1596, %v1596
        %v1601 = vpack.c.b16 %v1597, %v1597
        %v1602 = vpack.c.b16 %v1598, %v1598
        %s1607 = scalar_lea.vmem %s382, 48 [#allocation3]
        %1608 = vst.msk [vmem:[%s1607] sm:$0xf] %vm549, %v1599
        %1609 = vst.msk [vmem:[%s1607 + $0x4] sm:$0xf] %vm549, %v1600
        %1610 = vst.msk [vmem:[%s1607 + $0x8] sm:$0xf] %vm549, %v1601
        %1611 = vst.msk [vmem:[%s1607 + $0xc] sm:$0xf] %vm549, %v1602
        %s1612 = scalar_lea.vmem %s5, 96
        %v1613 = vld [vmem:[%s1612] sm:$0xf]
        %v1614 = vld [vmem:[%s1612 + $0x4] sm:$0xf]
        %v1615 = vld [vmem:[%s1612 + $0x8] sm:$0xf]
        %v1616 = vld [vmem:[%s1612 + $0xc] sm:$0xf]
        %v1617 = vld [vmem:[%s1612 + $0x10] sm:$0xf]
        %v1618 = vld [vmem:[%s1612 + $0x14] sm:$0xf]
        %v1619 = vld [vmem:[%s1612 + $0x18] sm:$0xf]
        %v1620 = vld [vmem:[%s1612 + $0x1c] sm:$0xf]
        %v1629 = vunpack.c.l.b16 %v1613
        %v1630 = vunpack.c.l.b16 %v1614
        %v1631 = vunpack.c.l.b16 %v1615
        %v1632 = vunpack.c.l.b16 %v1616
        %v1633 = vunpack.c.l.b16 %v1617
        %v1634 = vunpack.c.l.b16 %v1618
        %v1635 = vunpack.c.l.b16 %v1619
        %v1636 = vunpack.c.l.b16 %v1620
        %v1637 = vpack.c.b16 %v1630, %v1629
        %v1638 = vpack.c.b16 %v1632, %v1631
        %v1639 = vpack.c.b16 %v1634, %v1633
        %v1640 = vpack.c.b16 %v1636, %v1635
        %1645 = vmatprep.subr.bf16.mxu0 0
        %1646 = vmatpush1.bf16.msra.mxu0 0
        %1647 = vmatprep.subr.bf16.mxu0 0
        %1648 = vmatpush1.bf16.msra.mxu0 0
        %1649 = vmatprep.subr.bf16.mxu0 0
        %1650 = vmatpush1.bf16.msra.mxu0 0
        %1651 = vmatprep.subr.bf16.mxu0 0
        %1652 = vmatpush1.bf16.msra.mxu0 0
        %1653 = vmatprep.subr.bf16.mxu0 0
        %1654 = vmatpush1.bf16.msra.mxu0 %v1640
        %1655 = vmatprep.subr.bf16.mxu0 0
        %1656 = vmatpush1.bf16.msra.mxu0 %v1639
        %1657 = vmatprep.subr.bf16.mxu0 0
        %1658 = vmatpush1.bf16.msra.mxu0 %v1638
        %1659 = vmatprep.subr.bf16.mxu0 0
        %1660 = vmatpush1.bf16.msra.mxu0 %v1637
        %1661 = vmatprep.subr.bf16.mxu0 0
        %1662 = vmatpush2.bf16.msra.mxu0 0
        %1663 = vmatprep.subr.bf16.mxu0 0
        %1664 = vmatpush2.bf16.msra.mxu0 0
        %1665 = vmatprep.subr.bf16.mxu0 0
        %1666 = vmatpush2.bf16.msra.mxu0 0
        %1667 = vmatprep.subr.bf16.mxu0 0
        %1668 = vmatpush2.bf16.msra.mxu0 0
        %1669 = vmatprep.subr.bf16.mxu0 0
        %1670 = vmatpush2.bf16.msra.mxu0 0
        %1671 = vmatprep.subr.bf16.mxu0 0
        %1672 = vmatpush2.bf16.msra.mxu0 0
        %1673 = vmatprep.subr.bf16.mxu0 0
        %1674 = vmatpush2.bf16.msra.mxu0 0
        %1675 = vmatprep.subr.bf16.mxu0 0
        %1676 = vmatpush2.bf16.msra.mxu0 0
        %1677 = vmatprep.mubr.bf16.mxu0 0
        %1678 = vmatmul.mubr.bf16.gmra.mxu0 %v714
        %v1679 = vpop.f32.mrf.mxu0
        %v1680 = vadd.f32 0.0, %v1679
        %v1681 = vpop.f32.mrf.mxu0
        %v1682 = vpop.f32.mrf.mxu0
        %v1683 = vadd.f32 0.0, %v1682
        %v1684 = vpop.f32.mrf.mxu0
        %1685 = vmatprep.mubr.bf16.mxu0 0
        %1686 = vmatmul.mubr.bf16.gmra.mxu0 %v717
        %v1687 = vpop.f32.mrf.mxu0
        %v1688 = vadd.f32 0.0, %v1687
        %v1689 = vpop.f32.mrf.mxu0
        %v1690 = vpop.f32.mrf.mxu0
        %v1691 = vadd.f32 0.0, %v1690
        %v1692 = vpop.f32.mrf.mxu0
        %1693 = vdwg.mxu0
        %v1694 = vpack.c.bf16 %v1683, %v1680
        %v1695 = vpack.c.bf16 %v1691, %v1688
        %v1698 = vunpack.c.l.b16 %v1694
        %v1699 = vunpack.c.h.b16 %v1694
        %v1700 = vunpack.c.l.b16 %v1695
        %v1701 = vunpack.c.h.b16 %v1695
        %v1702 = vpack.c.b16 %v1698, %v1698
        %v1703 = vpack.c.b16 %v1699, %v1699
        %v1704 = vpack.c.b16 %v1700, %v1700
        %v1705 = vpack.c.b16 %v1701, %v1701
        %s1710 = scalar_lea.vmem %s388, 48 [#allocation4]
        %1711 = vst.msk [vmem:[%s1710] sm:$0xf] %vm549, %v1702
        %1712 = vst.msk [vmem:[%s1710 + $0x4] sm:$0xf] %vm549, %v1703
        %1713 = vst.msk [vmem:[%s1710 + $0x8] sm:$0xf] %vm549, %v1704
        %1714 = vst.msk [vmem:[%s1710 + $0xc] sm:$0xf] %vm549, %v1705
        %s1715 = sand.u32 %s189, 1
        %s1716 = sand.u32 %s189, 1
        %s1717 = smul.addr %s1716, 64
        %s1718 = scalar_lea.vmem [#allocation2], %s1717
        %s1719 = sand.u32 %s217, 1
        %s1720 = sand.u32 %s217, 1
        %s1721 = smul.addr %s1720, 64
        %s1722 = scalar_lea.vmem [#allocation3], %s1721
        %s1723 = sand.u32 %s245, 1
        %s1724 = sand.u32 %s245, 1
        %s1725 = smul.addr %s1724, 64
        %s1726 = scalar_lea.vmem [#allocation4], %s1725
        // Predicated region
        $region45: #{tpu_custom_call.1} parent=43 // pred_check
          %p1727 = pneg %p199
        $region46: #{tpu_custom_call.1} parent=43 // pred_check_branch
          %1729 = sbr.rel (%p1727) target = $region48
        $region47: #{tpu_custom_call.1} parent=43 // pred_region
          %s1730 = smul.u32 4, %s25
          %s1731 = smul.addr %s24, 32
          %s1732 = sadd.s32 %s1730, %s1731
          %s1733 = smul.addr %s1732, 4
          %s1734 = scalar_lea.vmem %s6, %s1733
          // Predicated region
          $region49: #{tpu_custom_call.1} parent=47 // pred_check
            _
          $region50: #{tpu_custom_call.1} parent=47 // pred_check_branch
            %1736 = sbr.rel (0) target = $region52
          $region51: #{tpu_custom_call.1} parent=47 // pred_region
            // Predicated region
            $region53: #{tpu_custom_call.1} parent=51 // pred_check
              _
            $region54: #{tpu_custom_call.1} parent=51 // pred_check_branch
              %1738 = sbr.rel target = $region56
            $region55: #{tpu_custom_call.1} parent=51 // pred_region
              // Predicated region
              $region68: #{tpu_custom_call.1} parent=55 // pred_check
                _
              $region69: #{tpu_custom_call.1} parent=55 // pred_check_branch
                %1784 = sbr.rel (0) target = $region71
              $region70: #{tpu_custom_call.1} parent=55 // pred_region
                loop: start=0, step=1, limit=1
                $region72: #{tpu_custom_call.1} parent=70 // loop_pre_header
                  _
                $region73: #{tpu_custom_call.1} parent=70 // loop_header
                  %s1786 = sphi 0, %s1790
                  %p1787 = scmp.ge.s32.totalorder %s1786, 1
                  %s1791 = sphi %s1718, %s1718
                  %s1792 = sphi %s1734, %s1734
                $region74: #{tpu_custom_call.1} parent=70 // loop_header_branch
                  %1789 = sbr.rel (%p1787) target = $region78
                $region75: #{tpu_custom_call.1} parent=70 // loop_body
                  _
                $region76: #{tpu_custom_call.1} parent=70 // loop_footer
                  %s1790 = sadd.s32 1, %s1786
                $region77: #{tpu_custom_call.1} parent=70 // loop_footer_branch
                  %1785 = sbr.rel target = $region73
                $region78: #{tpu_custom_call.1} parent=70 // loop_exit
                  _
                %s1794 = ssub.s32 16, 1
                loop: start=0, step=1, limit=1
                $region79: #{tpu_custom_call.1} parent=70 // loop_pre_header
                  _
                $region80: #{tpu_custom_call.1} parent=70 // loop_header
                  %s1796 = sphi 0, %s1800
                  %p1797 = scmp.ge.s32.totalorder %s1796, 1
                  %s1801 = sphi %s1718, %s1718
                  %s1802 = sphi %s1734, %s1734
                $region81: #{tpu_custom_call.1} parent=70 // loop_header_branch
                  %1799 = sbr.rel (%p1797) target = $region85
                $region82: #{tpu_custom_call.1} parent=70 // loop_body
                  %v1803 = vld [vmem:[%s1801] sm:%s1794]
                  %1804 = vst [vmem:[%s1802] sm:%s1794] %v1803
                  %v1805 = vld [vmem:[%s1801 + $0x4] sm:%s1794]
                  %1806 = vst [vmem:[%s1802 + $0x4] sm:%s1794] %v1805
                  %v1807 = vld [vmem:[%s1801 + $0x8] sm:%s1794]
                  %1808 = vst [vmem:[%s1802 + $0x8] sm:%s1794] %v1807
                  %v1809 = vld [vmem:[%s1801 + $0xc] sm:%s1794]
                  %1810 = vst [vmem:[%s1802 + $0xc] sm:%s1794] %v1809
                  %v1811 = vld [vmem:[%s1801 + $0x10] sm:%s1794]
                  %1812 = vst [vmem:[%s1802 + $0x20] sm:%s1794] %v1811
                  %v1813 = vld [vmem:[%s1801 + $0x14] sm:%s1794]
                  %1814 = vst [vmem:[%s1802 + $0x24] sm:%s1794] %v1813
                  %v1815 = vld [vmem:[%s1801 + $0x18] sm:%s1794]
                  %1816 = vst [vmem:[%s1802 + $0x28] sm:%s1794] %v1815
                  %v1817 = vld [vmem:[%s1801 + $0x1c] sm:%s1794]
                  %1818 = vst [vmem:[%s1802 + $0x2c] sm:%s1794] %v1817
                  %v1819 = vld [vmem:[%s1801 + $0x20] sm:%s1794]
                  %1820 = vst [vmem:[%s1802 + $0x40] sm:%s1794] %v1819
                  %v1821 = vld [vmem:[%s1801 + $0x24] sm:%s1794]
                  %1822 = vst [vmem:[%s1802 + $0x44] sm:%s1794] %v1821
                  %v1823 = vld [vmem:[%s1801 + $0x28] sm:%s1794]
                  %1824 = vst [vmem:[%s1802 + $0x48] sm:%s1794] %v1823
                  %v1825 = vld [vmem:[%s1801 + $0x2c] sm:%s1794]
                  %1826 = vst [vmem:[%s1802 + $0x4c] sm:%s1794] %v1825
                  %v1827 = vld [vmem:[%s1801 + $0x30] sm:%s1794]
                  %1828 = vst [vmem:[%s1802 + $0x60] sm:%s1794] %v1827
                  %v1829 = vld [vmem:[%s1801 + $0x34] sm:%s1794]
                  %1830 = vst [vmem:[%s1802 + $0x64] sm:%s1794] %v1829
                  %v1831 = vld [vmem:[%s1801 + $0x38] sm:%s1794]
                  %1832 = vst [vmem:[%s1802 + $0x68] sm:%s1794] %v1831
                  %v1833 = vld [vmem:[%s1801 + $0x3c] sm:%s1794]
                  %1834 = vst [vmem:[%s1802 + $0x6c] sm:%s1794] %v1833
                $region83: #{tpu_custom_call.1} parent=70 // loop_footer
                  %s1800 = sadd.s32 1, %s1796
                $region84: #{tpu_custom_call.1} parent=70 // loop_footer_branch
                  %1795 = sbr.rel target = $region80
                $region85: #{tpu_custom_call.1} parent=70 // loop_exit
                  _
              $region71: #{tpu_custom_call.1} parent=55 // pred_fallthru
                _
            $region56: #{tpu_custom_call.1} parent=51 // pred_fallthru
              _
            // Predicated region
            $region57: #{tpu_custom_call.1} parent=51 // pred_check
              _
            $region58: #{tpu_custom_call.1} parent=51 // pred_check_branch
              %1740 = sbr.rel (0) target = $region60
            $region59: #{tpu_custom_call.1} parent=51 // pred_region
              %s1742 = ssub.s32 16, 1
              loop: start=0, step=1, limit=1
              $region61: #{tpu_custom_call.1} parent=59 // loop_pre_header
                _
              $region62: #{tpu_custom_call.1} parent=59 // loop_header
                %s1744 = sphi 0, %s1748
                %p1745 = scmp.ge.s32.totalorder %s1744, 1
                %s1749 = sphi %s1718, %s1718
                %s1750 = sphi %s1734, %s1734
              $region63: #{tpu_custom_call.1} parent=59 // loop_header_branch
                %1747 = sbr.rel (%p1745) target = $region67
              $region64: #{tpu_custom_call.1} parent=59 // loop_body
                %v1751 = vld [vmem:[%s1749] sm:%s1742]
                %1752 = vst [vmem:[%s1750] sm:%s1742] %v1751
                %v1753 = vld [vmem:[%s1749 + $0x4] sm:%s1742]
                %1754 = vst [vmem:[%s1750 + $0x4] sm:%s1742] %v1753
                %v1755 = vld [vmem:[%s1749 + $0x8] sm:%s1742]
                %1756 = vst [vmem:[%s1750 + $0x8] sm:%s1742] %v1755
                %v1757 = vld [vmem:[%s1749 + $0xc] sm:%s1742]
                %1758 = vst [vmem:[%s1750 + $0xc] sm:%s1742] %v1757
                %v1759 = vld [vmem:[%s1749 + $0x10] sm:%s1742]
                %1760 = vst [vmem:[%s1750 + $0x20] sm:%s1742] %v1759
                %v1761 = vld [vmem:[%s1749 + $0x14] sm:%s1742]
                %1762 = vst [vmem:[%s1750 + $0x24] sm:%s1742] %v1761
                %v1763 = vld [vmem:[%s1749 + $0x18] sm:%s1742]
                %1764 = vst [vmem:[%s1750 + $0x28] sm:%s1742] %v1763
                %v1765 = vld [vmem:[%s1749 + $0x1c] sm:%s1742]
                %1766 = vst [vmem:[%s1750 + $0x2c] sm:%s1742] %v1765
                %v1767 = vld [vmem:[%s1749 + $0x20] sm:%s1742]
                %1768 = vst [vmem:[%s1750 + $0x40] sm:%s1742] %v1767
                %v1769 = vld [vmem:[%s1749 + $0x24] sm:%s1742]
                %1770 = vst [vmem:[%s1750 + $0x44] sm:%s1742] %v1769
                %v1771 = vld [vmem:[%s1749 + $0x28] sm:%s1742]
                %1772 = vst [vmem:[%s1750 + $0x48] sm:%s1742] %v1771
                %v1773 = vld [vmem:[%s1749 + $0x2c] sm:%s1742]
                %1774 = vst [vmem:[%s1750 + $0x4c] sm:%s1742] %v1773
                %v1775 = vld [vmem:[%s1749 + $0x30] sm:%s1742]
                %1776 = vst [vmem:[%s1750 + $0x60] sm:%s1742] %v1775
                %v1777 = vld [vmem:[%s1749 + $0x34] sm:%s1742]
                %1778 = vst [vmem:[%s1750 + $0x64] sm:%s1742] %v1777
                %v1779 = vld [vmem:[%s1749 + $0x38] sm:%s1742]
                %1780 = vst [vmem:[%s1750 + $0x68] sm:%s1742] %v1779
                %v1781 = vld [vmem:[%s1749 + $0x3c] sm:%s1742]
                %1782 = vst [vmem:[%s1750 + $0x6c] sm:%s1742] %v1781
              $region65: #{tpu_custom_call.1} parent=59 // loop_footer
                %s1748 = sadd.s32 1, %s1744
              $region66: #{tpu_custom_call.1} parent=59 // loop_footer_branch
                %1743 = sbr.rel target = $region62
              $region67: #{tpu_custom_call.1} parent=59 // loop_exit
                _
            $region60: #{tpu_custom_call.1} parent=51 // pred_fallthru
              _
          $region52: #{tpu_custom_call.1} parent=47 // pred_fallthru
            _
          %1835 = vnop
        $region48: #{tpu_custom_call.1} parent=43 // pred_fallthru
          _
        // Predicated region
        $region86: #{tpu_custom_call.1} parent=43 // pred_check
          %p1836 = pneg %p227
        $region87: #{tpu_custom_call.1} parent=43 // pred_check_branch
          %1838 = sbr.rel (%p1836) target = $region89
        $region88: #{tpu_custom_call.1} parent=43 // pred_region
          %s1839 = smul.u32 4, %s25
          %s1840 = smul.addr %s24, 32
          %s1841 = sadd.s32 %s1839, %s1840
          %s1842 = smul.addr %s1841, 4
          %s1843 = scalar_lea.vmem %s7, %s1842
          // Predicated region
          $region90: #{tpu_custom_call.1} parent=88 // pred_check
            _
          $region91: #{tpu_custom_call.1} parent=88 // pred_check_branch
            %1845 = sbr.rel (0) target = $region93
          $region92: #{tpu_custom_call.1} parent=88 // pred_region
            // Predicated region
            $region94: #{tpu_custom_call.1} parent=92 // pred_check
              _
            $region95: #{tpu_custom_call.1} parent=92 // pred_check_branch
              %1847 = sbr.rel target = $region97
            $region96: #{tpu_custom_call.1} parent=92 // pred_region
              // Predicated region
              $region109: #{tpu_custom_call.1} parent=96 // pred_check
                _
              $region110: #{tpu_custom_call.1} parent=96 // pred_check_branch
                %1893 = sbr.rel (0) target = $region112
              $region111: #{tpu_custom_call.1} parent=96 // pred_region
                loop: start=0, step=1, limit=1
                $region113: #{tpu_custom_call.1} parent=111 // loop_pre_header
                  _
                $region114: #{tpu_custom_call.1} parent=111 // loop_header
                  %s1895 = sphi 0, %s1899
                  %p1896 = scmp.ge.s32.totalorder %s1895, 1
                  %s1900 = sphi %s1722, %s1722
                  %s1901 = sphi %s1843, %s1843
                $region115: #{tpu_custom_call.1} parent=111 // loop_header_branch
                  %1898 = sbr.rel (%p1896) target = $region119
                $region116: #{tpu_custom_call.1} parent=111 // loop_body
                  _
                $region117: #{tpu_custom_call.1} parent=111 // loop_footer
                  %s1899 = sadd.s32 1, %s1895
                $region118: #{tpu_custom_call.1} parent=111 // loop_footer_branch
                  %1894 = sbr.rel target = $region114
                $region119: #{tpu_custom_call.1} parent=111 // loop_exit
                  _
                %s1903 = ssub.s32 16, 1
                loop: start=0, step=1, limit=1
                $region120: #{tpu_custom_call.1} parent=111 // loop_pre_header
                  _
                $region121: #{tpu_custom_call.1} parent=111 // loop_header
                  %s1905 = sphi 0, %s1909
                  %p1906 = scmp.ge.s32.totalorder %s1905, 1
                  %s1910 = sphi %s1722, %s1722
                  %s1911 = sphi %s1843, %s1843
                $region122: #{tpu_custom_call.1} parent=111 // loop_header_branch
                  %1908 = sbr.rel (%p1906) target = $region126
                $region123: #{tpu_custom_call.1} parent=111 // loop_body
                  %v1912 = vld [vmem:[%s1910] sm:%s1903]
                  %1913 = vst [vmem:[%s1911] sm:%s1903] %v1912
                  %v1914 = vld [vmem:[%s1910 + $0x4] sm:%s1903]
                  %1915 = vst [vmem:[%s1911 + $0x4] sm:%s1903] %v1914
                  %v1916 = vld [vmem:[%s1910 + $0x8] sm:%s1903]
                  %1917 = vst [vmem:[%s1911 + $0x8] sm:%s1903] %v1916
                  %v1918 = vld [vmem:[%s1910 + $0xc] sm:%s1903]
                  %1919 = vst [vmem:[%s1911 + $0xc] sm:%s1903] %v1918
                  %v1920 = vld [vmem:[%s1910 + $0x10] sm:%s1903]
                  %1921 = vst [vmem:[%s1911 + $0x20] sm:%s1903] %v1920
                  %v1922 = vld [vmem:[%s1910 + $0x14] sm:%s1903]
                  %1923 = vst [vmem:[%s1911 + $0x24] sm:%s1903] %v1922
                  %v1924 = vld [vmem:[%s1910 + $0x18] sm:%s1903]
                  %1925 = vst [vmem:[%s1911 + $0x28] sm:%s1903] %v1924
                  %v1926 = vld [vmem:[%s1910 + $0x1c] sm:%s1903]
                  %1927 = vst [vmem:[%s1911 + $0x2c] sm:%s1903] %v1926
                  %v1928 = vld [vmem:[%s1910 + $0x20] sm:%s1903]
                  %1929 = vst [vmem:[%s1911 + $0x40] sm:%s1903] %v1928
                  %v1930 = vld [vmem:[%s1910 + $0x24] sm:%s1903]
                  %1931 = vst [vmem:[%s1911 + $0x44] sm:%s1903] %v1930
                  %v1932 = vld [vmem:[%s1910 + $0x28] sm:%s1903]
                  %1933 = vst [vmem:[%s1911 + $0x48] sm:%s1903] %v1932
                  %v1934 = vld [vmem:[%s1910 + $0x2c] sm:%s1903]
                  %1935 = vst [vmem:[%s1911 + $0x4c] sm:%s1903] %v1934
                  %v1936 = vld [vmem:[%s1910 + $0x30] sm:%s1903]
                  %1937 = vst [vmem:[%s1911 + $0x60] sm:%s1903] %v1936
                  %v1938 = vld [vmem:[%s1910 + $0x34] sm:%s1903]
                  %1939 = vst [vmem:[%s1911 + $0x64] sm:%s1903] %v1938
                  %v1940 = vld [vmem:[%s1910 + $0x38] sm:%s1903]
                  %1941 = vst [vmem:[%s1911 + $0x68] sm:%s1903] %v1940
                  %v1942 = vld [vmem:[%s1910 + $0x3c] sm:%s1903]
                  %1943 = vst [vmem:[%s1911 + $0x6c] sm:%s1903] %v1942
                $region124: #{tpu_custom_call.1} parent=111 // loop_footer
                  %s1909 = sadd.s32 1, %s1905
                $region125: #{tpu_custom_call.1} parent=111 // loop_footer_branch
                  %1904 = sbr.rel target = $region121
                $region126: #{tpu_custom_call.1} parent=111 // loop_exit
                  _
              $region112: #{tpu_custom_call.1} parent=96 // pred_fallthru
                _
            $region97: #{tpu_custom_call.1} parent=92 // pred_fallthru
              _
            // Predicated region
            $region98: #{tpu_custom_call.1} parent=92 // pred_check
              _
            $region99: #{tpu_custom_call.1} parent=92 // pred_check_branch
              %1849 = sbr.rel (0) target = $region101
            $region100: #{tpu_custom_call.1} parent=92 // pred_region
              %s1851 = ssub.s32 16, 1
              loop: start=0, step=1, limit=1
              $region102: #{tpu_custom_call.1} parent=100 // loop_pre_header
                _
              $region103: #{tpu_custom_call.1} parent=100 // loop_header
                %s1853 = sphi 0, %s1857
                %p1854 = scmp.ge.s32.totalorder %s1853, 1
                %s1858 = sphi %s1722, %s1722
                %s1859 = sphi %s1843, %s1843
              $region104: #{tpu_custom_call.1} parent=100 // loop_header_branch
                %1856 = sbr.rel (%p1854) target = $region108
              $region105: #{tpu_custom_call.1} parent=100 // loop_body
                %v1860 = vld [vmem:[%s1858] sm:%s1851]
                %1861 = vst [vmem:[%s1859] sm:%s1851] %v1860
                %v1862 = vld [vmem:[%s1858 + $0x4] sm:%s1851]
                %1863 = vst [vmem:[%s1859 + $0x4] sm:%s1851] %v1862
                %v1864 = vld [vmem:[%s1858 + $0x8] sm:%s1851]
                %1865 = vst [vmem:[%s1859 + $0x8] sm:%s1851] %v1864
                %v1866 = vld [vmem:[%s1858 + $0xc] sm:%s1851]
                %1867 = vst [vmem:[%s1859 + $0xc] sm:%s1851] %v1866
                %v1868 = vld [vmem:[%s1858 + $0x10] sm:%s1851]
                %1869 = vst [vmem:[%s1859 + $0x20] sm:%s1851] %v1868
                %v1870 = vld [vmem:[%s1858 + $0x14] sm:%s1851]
                %1871 = vst [vmem:[%s1859 + $0x24] sm:%s1851] %v1870
                %v1872 = vld [vmem:[%s1858 + $0x18] sm:%s1851]
                %1873 = vst [vmem:[%s1859 + $0x28] sm:%s1851] %v1872
                %v1874 = vld [vmem:[%s1858 + $0x1c] sm:%s1851]
                %1875 = vst [vmem:[%s1859 + $0x2c] sm:%s1851] %v1874
                %v1876 = vld [vmem:[%s1858 + $0x20] sm:%s1851]
                %1877 = vst [vmem:[%s1859 + $0x40] sm:%s1851] %v1876
                %v1878 = vld [vmem:[%s1858 + $0x24] sm:%s1851]
                %1879 = vst [vmem:[%s1859 + $0x44] sm:%s1851] %v1878
                %v1880 = vld [vmem:[%s1858 + $0x28] sm:%s1851]
                %1881 = vst [vmem:[%s1859 + $0x48] sm:%s1851] %v1880
                %v1882 = vld [vmem:[%s1858 + $0x2c] sm:%s1851]
                %1883 = vst [vmem:[%s1859 + $0x4c] sm:%s1851] %v1882
                %v1884 = vld [vmem:[%s1858 + $0x30] sm:%s1851]
                %1885 = vst [vmem:[%s1859 + $0x60] sm:%s1851] %v1884
                %v1886 = vld [vmem:[%s1858 + $0x34] sm:%s1851]
                %1887 = vst [vmem:[%s1859 + $0x64] sm:%s1851] %v1886
                %v1888 = vld [vmem:[%s1858 + $0x38] sm:%s1851]
                %1889 = vst [vmem:[%s1859 + $0x68] sm:%s1851] %v1888
                %v1890 = vld [vmem:[%s1858 + $0x3c] sm:%s1851]
                %1891 = vst [vmem:[%s1859 + $0x6c] sm:%s1851] %v1890
              $region106: #{tpu_custom_call.1} parent=100 // loop_footer
                %s1857 = sadd.s32 1, %s1853
              $region107: #{tpu_custom_call.1} parent=100 // loop_footer_branch
                %1852 = sbr.rel target = $region103
              $region108: #{tpu_custom_call.1} parent=100 // loop_exit
                _
            $region101: #{tpu_custom_call.1} parent=92 // pred_fallthru
              _
          $region93: #{tpu_custom_call.1} parent=88 // pred_fallthru
            _
          %1944 = vnop
        $region89: #{tpu_custom_call.1} parent=43 // pred_fallthru
          _
        // Predicated region
        $region127: #{tpu_custom_call.1} parent=43 // pred_check
          %p1945 = pneg %p255
        $region128: #{tpu_custom_call.1} parent=43 // pred_check_branch
          %1947 = sbr.rel (%p1945) target = $region130
        $region129: #{tpu_custom_call.1} parent=43 // pred_region
          %s1948 = smul.u32 4, %s25
          %s1949 = smul.addr %s24, 32
          %s1950 = sadd.s32 %s1948, %s1949
          %s1951 = smul.addr %s1950, 4
          %s1952 = scalar_lea.vmem %s8, %s1951
          // Predicated region
          $region131: #{tpu_custom_call.1} parent=129 // pred_check
            _
          $region132: #{tpu_custom_call.1} parent=129 // pred_check_branch
            %1954 = sbr.rel (0) target = $region134
          $region133: #{tpu_custom_call.1} parent=129 // pred_region
            // Predicated region
            $region135: #{tpu_custom_call.1} parent=133 // pred_check
              _
            $region136: #{tpu_custom_call.1} parent=133 // pred_check_branch
              %1956 = sbr.rel target = $region138
            $region137: #{tpu_custom_call.1} parent=133 // pred_region
              // Predicated region
              $region150: #{tpu_custom_call.1} parent=137 // pred_check
                _
              $region151: #{tpu_custom_call.1} parent=137 // pred_check_branch
                %2002 = sbr.rel (0) target = $region153
              $region152: #{tpu_custom_call.1} parent=137 // pred_region
                loop: start=0, step=1, limit=1
                $region154: #{tpu_custom_call.1} parent=152 // loop_pre_header
                  _
                $region155: #{tpu_custom_call.1} parent=152 // loop_header
                  %s2004 = sphi 0, %s2008
                  %p2005 = scmp.ge.s32.totalorder %s2004, 1
                  %s2009 = sphi %s1726, %s1726
                  %s2010 = sphi %s1952, %s1952
                $region156: #{tpu_custom_call.1} parent=152 // loop_header_branch
                  %2007 = sbr.rel (%p2005) target = $region160
                $region157: #{tpu_custom_call.1} parent=152 // loop_body
                  _
                $region158: #{tpu_custom_call.1} parent=152 // loop_footer
                  %s2008 = sadd.s32 1, %s2004
                $region159: #{tpu_custom_call.1} parent=152 // loop_footer_branch
                  %2003 = sbr.rel target = $region155
                $region160: #{tpu_custom_call.1} parent=152 // loop_exit
                  _
                %s2012 = ssub.s32 16, 1
                loop: start=0, step=1, limit=1
                $region161: #{tpu_custom_call.1} parent=152 // loop_pre_header
                  _
                $region162: #{tpu_custom_call.1} parent=152 // loop_header
                  %s2014 = sphi 0, %s2018
                  %p2015 = scmp.ge.s32.totalorder %s2014, 1
                  %s2019 = sphi %s1726, %s1726
                  %s2020 = sphi %s1952, %s1952
                $region163: #{tpu_custom_call.1} parent=152 // loop_header_branch
                  %2017 = sbr.rel (%p2015) target = $region167
                $region164: #{tpu_custom_call.1} parent=152 // loop_body
                  %v2021 = vld [vmem:[%s2019] sm:%s2012]
                  %2022 = vst [vmem:[%s2020] sm:%s2012] %v2021
                  %v2023 = vld [vmem:[%s2019 + $0x4] sm:%s2012]
                  %2024 = vst [vmem:[%s2020 + $0x4] sm:%s2012] %v2023
                  %v2025 = vld [vmem:[%s2019 + $0x8] sm:%s2012]
                  %2026 = vst [vmem:[%s2020 + $0x8] sm:%s2012] %v2025
                  %v2027 = vld [vmem:[%s2019 + $0xc] sm:%s2012]
                  %2028 = vst [vmem:[%s2020 + $0xc] sm:%s2012] %v2027
                  %v2029 = vld [vmem:[%s2019 + $0x10] sm:%s2012]
                  %2030 = vst [vmem:[%s2020 + $0x20] sm:%s2012] %v2029
                  %v2031 = vld [vmem:[%s2019 + $0x14] sm:%s2012]
                  %2032 = vst [vmem:[%s2020 + $0x24] sm:%s2012] %v2031
                  %v2033 = vld [vmem:[%s2019 + $0x18] sm:%s2012]
                  %2034 = vst [vmem:[%s2020 + $0x28] sm:%s2012] %v2033
                  %v2035 = vld [vmem:[%s2019 + $0x1c] sm:%s2012]
                  %2036 = vst [vmem:[%s2020 + $0x2c] sm:%s2012] %v2035
                  %v2037 = vld [vmem:[%s2019 + $0x20] sm:%s2012]
                  %2038 = vst [vmem:[%s2020 + $0x40] sm:%s2012] %v2037
                  %v2039 = vld [vmem:[%s2019 + $0x24] sm:%s2012]
                  %2040 = vst [vmem:[%s2020 + $0x44] sm:%s2012] %v2039
                  %v2041 = vld [vmem:[%s2019 + $0x28] sm:%s2012]
                  %2042 = vst [vmem:[%s2020 + $0x48] sm:%s2012] %v2041
                  %v2043 = vld [vmem:[%s2019 + $0x2c] sm:%s2012]
                  %2044 = vst [vmem:[%s2020 + $0x4c] sm:%s2012] %v2043
                  %v2045 = vld [vmem:[%s2019 + $0x30] sm:%s2012]
                  %2046 = vst [vmem:[%s2020 + $0x60] sm:%s2012] %v2045
                  %v2047 = vld [vmem:[%s2019 + $0x34] sm:%s2012]
                  %2048 = vst [vmem:[%s2020 + $0x64] sm:%s2012] %v2047
                  %v2049 = vld [vmem:[%s2019 + $0x38] sm:%s2012]
                  %2050 = vst [vmem:[%s2020 + $0x68] sm:%s2012] %v2049
                  %v2051 = vld [vmem:[%s2019 + $0x3c] sm:%s2012]
                  %2052 = vst [vmem:[%s2020 + $0x6c] sm:%s2012] %v2051
                $region165: #{tpu_custom_call.1} parent=152 // loop_footer
                  %s2018 = sadd.s32 1, %s2014
                $region166: #{tpu_custom_call.1} parent=152 // loop_footer_branch
                  %2013 = sbr.rel target = $region162
                $region167: #{tpu_custom_call.1} parent=152 // loop_exit
                  _
              $region153: #{tpu_custom_call.1} parent=137 // pred_fallthru
                _
            $region138: #{tpu_custom_call.1} parent=133 // pred_fallthru
              _
            // Predicated region
            $region139: #{tpu_custom_call.1} parent=133 // pred_check
              _
            $region140: #{tpu_custom_call.1} parent=133 // pred_check_branch
              %1958 = sbr.rel (0) target = $region142
            $region141: #{tpu_custom_call.1} parent=133 // pred_region
              %s1960 = ssub.s32 16, 1
              loop: start=0, step=1, limit=1
              $region143: #{tpu_custom_call.1} parent=141 // loop_pre_header
                _
              $region144: #{tpu_custom_call.1} parent=141 // loop_header
                %s1962 = sphi 0, %s1966
                %p1963 = scmp.ge.s32.totalorder %s1962, 1
                %s1967 = sphi %s1726, %s1726
                %s1968 = sphi %s1952, %s1952
              $region145: #{tpu_custom_call.1} parent=141 // loop_header_branch
                %1965 = sbr.rel (%p1963) target = $region149
              $region146: #{tpu_custom_call.1} parent=141 // loop_body
                %v1969 = vld [vmem:[%s1967] sm:%s1960]
                %1970 = vst [vmem:[%s1968] sm:%s1960] %v1969
                %v1971 = vld [vmem:[%s1967 + $0x4] sm:%s1960]
                %1972 = vst [vmem:[%s1968 + $0x4] sm:%s1960] %v1971
                %v1973 = vld [vmem:[%s1967 + $0x8] sm:%s1960]
                %1974 = vst [vmem:[%s1968 + $0x8] sm:%s1960] %v1973
                %v1975 = vld [vmem:[%s1967 + $0xc] sm:%s1960]
                %1976 = vst [vmem:[%s1968 + $0xc] sm:%s1960] %v1975
                %v1977 = vld [vmem:[%s1967 + $0x10] sm:%s1960]
                %1978 = vst [vmem:[%s1968 + $0x20] sm:%s1960] %v1977
                %v1979 = vld [vmem:[%s1967 + $0x14] sm:%s1960]
                %1980 = vst [vmem:[%s1968 + $0x24] sm:%s1960] %v1979
                %v1981 = vld [vmem:[%s1967 + $0x18] sm:%s1960]
                %1982 = vst [vmem:[%s1968 + $0x28] sm:%s1960] %v1981
                %v1983 = vld [vmem:[%s1967 + $0x1c] sm:%s1960]
                %1984 = vst [vmem:[%s1968 + $0x2c] sm:%s1960] %v1983
                %v1985 = vld [vmem:[%s1967 + $0x20] sm:%s1960]
                %1986 = vst [vmem:[%s1968 + $0x40] sm:%s1960] %v1985
                %v1987 = vld [vmem:[%s1967 + $0x24] sm:%s1960]
                %1988 = vst [vmem:[%s1968 + $0x44] sm:%s1960] %v1987
                %v1989 = vld [vmem:[%s1967 + $0x28] sm:%s1960]
                %1990 = vst [vmem:[%s1968 + $0x48] sm:%s1960] %v1989
                %v1991 = vld [vmem:[%s1967 + $0x2c] sm:%s1960]
                %1992 = vst [vmem:[%s1968 + $0x4c] sm:%s1960] %v1991
                %v1993 = vld [vmem:[%s1967 + $0x30] sm:%s1960]
                %1994 = vst [vmem:[%s1968 + $0x60] sm:%s1960] %v1993
                %v1995 = vld [vmem:[%s1967 + $0x34] sm:%s1960]
                %1996 = vst [vmem:[%s1968 + $0x64] sm:%s1960] %v1995
                %v1997 = vld [vmem:[%s1967 + $0x38] sm:%s1960]
                %1998 = vst [vmem:[%s1968 + $0x68] sm:%s1960] %v1997
                %v1999 = vld [vmem:[%s1967 + $0x3c] sm:%s1960]
                %2000 = vst [vmem:[%s1968 + $0x6c] sm:%s1960] %v1999
              $region147: #{tpu_custom_call.1} parent=141 // loop_footer
                %s1966 = sadd.s32 1, %s1962
              $region148: #{tpu_custom_call.1} parent=141 // loop_footer_branch
                %1961 = sbr.rel target = $region144
              $region149: #{tpu_custom_call.1} parent=141 // loop_exit
                _
            $region142: #{tpu_custom_call.1} parent=133 // pred_fallthru
              _
          $region134: #{tpu_custom_call.1} parent=129 // pred_fallthru
            _
          %2053 = vnop
        $region130: #{tpu_custom_call.1} parent=43 // pred_fallthru
          _
      $region44: #{tpu_custom_call.1} parent=5 // pred_fallthru
        _
      %p2054 = scmp.le.s32.totalorder 2, %s15
      // Predicated region
      $region168: #{tpu_custom_call.1} parent=5 // pred_check
        %p2055 = pneg %p2054
      $region169: #{tpu_custom_call.1} parent=5 // pred_check_branch
        %2057 = sbr.rel (%p2055) target = $region171
      $region170: #{tpu_custom_call.1} parent=5 // pred_region
        %s2058 = ssub.s32 %s15, 2
        // Predicated region
        $region172: #{tpu_custom_call.1} parent=170 // pred_check
          %p2059 = pneg %p205
        $region173: #{tpu_custom_call.1} parent=170 // pred_check_branch
          %2061 = sbr.rel (%p2059) target = $region175
        $region174: #{tpu_custom_call.1} parent=170 // pred_region
          %s2062 = sand.u32 %s190, 1
          %s2063 = sand.u32 %s190, 1
          %s2064 = smul.addr %s2063, 64
          %s2065 = scalar_lea.vmem [#allocation2], %s2064
        $region175: #{tpu_custom_call.1} parent=170 // pred_fallthru
          _
        // Predicated region
        $region176: #{tpu_custom_call.1} parent=170 // pred_check
          %p2066 = pneg %p233
        $region177: #{tpu_custom_call.1} parent=170 // pred_check_branch
          %2068 = sbr.rel (%p2066) target = $region179
        $region178: #{tpu_custom_call.1} parent=170 // pred_region
          %s2069 = sand.u32 %s218, 1
          %s2070 = sand.u32 %s218, 1
          %s2071 = smul.addr %s2070, 64
          %s2072 = scalar_lea.vmem [#allocation3], %s2071
        $region179: #{tpu_custom_call.1} parent=170 // pred_fallthru
          _
        // Predicated region
        $region180: #{tpu_custom_call.1} parent=170 // pred_check
          %p2073 = pneg %p261
        $region181: #{tpu_custom_call.1} parent=170 // pred_check_branch
          %2075 = sbr.rel (%p2073) target = $region183
        $region182: #{tpu_custom_call.1} parent=170 // pred_region
          %s2076 = sand.u32 %s246, 1
          %s2077 = sand.u32 %s246, 1
          %s2078 = smul.addr %s2077, 64
          %s2079 = scalar_lea.vmem [#allocation4], %s2078
        $region183: #{tpu_custom_call.1} parent=170 // pred_fallthru
          _
      $region171: #{tpu_custom_call.1} parent=5 // pred_fallthru
        _
    $region6: #{tpu_custom_call.1} parent=1 // loop_footer
      %s19 = sadd.s32 1, %s15
    $region7: #{tpu_custom_call.1} parent=1 // loop_footer_branch
      %14 = sbr.rel target = $region3
    $region8: #{tpu_custom_call.1} parent=1 // loop_exit
      _

</llo_original>
